<compile_context>
chip_gen: v7x
topology: tpu7x:2x2x1
jax: 0.10.0
libtpu: 0.0.40
codegen_flags: <defaults>
</compile_context>

<pallas_src>
import functools

import jax
import jax.numpy as jnp
from jax import lax
from jax.experimental import pallas as pl
from jax.experimental.pallas import tpu as pltpu

DIM = 50
NUM_HEADS = 5
HEAD_DIM = DIM // NUM_HEADS          # 10
SCALE = HEAD_DIM ** (-0.5)           # qk_scale = head_dim ** -0.5
LN_EPS = 1e-5

# Lane-aligned padded layout (wrapper-side zero padding, exact semantics).
C_PAD = 128                          # channel dim padded to one lane tile
H_PAD = 8                            # 5 real heads + 3 all-zero heads
HD_PAD = 16                          # 10 real head chans + 6 zero chans
QKV_PAD = H_PAD * HD_PAD             # 128 (per q / k / v slab)


# --------------------------------------------------------------------------
# in-kernel building blocks
# --------------------------------------------------------------------------
def _layernorm(x, w, b, ch_mask):
    """LayerNorm over the first DIM (real) channels of a (rows, C_PAD) slab."""
    # padded channels of x are exactly zero, so the 128-lane sum equals the
    # sum over the 50 real channels.
    mean = jnp.sum(x, axis=-1, keepdims=True) * (1.0 / DIM)
    d = (x - mean) * ch_mask
    var = jnp.sum(d * d, axis=-1, keepdims=True) * (1.0 / DIM)
    return d * lax.rsqrt(var + LN_EPS) * w + b      # w,b are zero in padding


def _transformer_kernel(x_ref, hm_ref, bd_ref, km_ref,
                        ln_w1, ln_b1, qkv_w1, proj_w1, proj_b1,
                        ln_w2, ln_b2, qkv_w2, proj_w2, proj_b2,
                        o_ref, *, bs, n_pad):
    """Both fused ResidualAdd(Attention) blocks on one batch chunk."""
    rows = bs * n_pad
    m = H_PAD * n_pad

    # Channel-validity mask for LayerNorm (hoisted; built once per program).
    ch_mask = (lax.broadcasted_iota(jnp.int32, (1, C_PAD), 1) < DIM
               ).astype(jnp.float32)
    head_mask = hm_ref[...]          # (H_PAD, 1, C_PAD) : 1 iff lane // 16 == h
    bd = bd_ref[...]                 # (m, m)            : per-head block-diag 1s
    key_mask = km_ref[...]           # (1, m)            : 1 iff real token pos

    def block(x2, ln_w, ln_b, w_qkv, w_proj, b_proj):
        xn = _layernorm(x2, ln_w[...], ln_b[...], ch_mask)          # (R, 128)

        # qkv = ReLU(Linear(50->150)) in padded 128->384 layout; the qk scale
        # is already folded into the q columns of w_qkv.
        qkv = jnp.dot(xn, w_qkv[...], preferred_element_type=jnp.float32)
        qkv = jnp.maximum(qkv, 0.0)                                  # (R, 384)

        # 128-lane-aligned q/k/v slabs; leading-dim-only reshapes (layout no-op
        # since n_pad % 8 == 0).
        q = qkv[:, 0 * QKV_PAD:1 * QKV_PAD].reshape(bs, n_pad, C_PAD)
        k = qkv[:, 1 * QKV_PAD:2 * QKV_PAD].reshape(bs, n_pad, C_PAD)
        v = qkv[:, 2 * QKV_PAD:3 * QKV_PAD].reshape(bs, n_pad, C_PAD)

        # Head-masked expanded keys/values: row h*n_pad + t holds token t with
        # only head h's channels kept.  Avoids lane-splitting reshapes.
        k_exp = (k[:, None, :, :] * head_mask[None]).reshape(bs, m, C_PAD)
        v_exp = (v[:, None, :, :] * head_mask[None]).reshape(bs, m, C_PAD)

        # Scores for all heads at once: S[b, n, h*n_pad + t] = q_h[n]·k_h[t].
        s = jnp.einsum("bnc,bmc->bnm", q, k_exp,
                       preferred_element_type=jnp.float32)           # (B,N,m)
        # Per-row max (same shift for every head segment => softmax-safe).
        p = jnp.exp(s - jnp.max(s, axis=-1, keepdims=True))
        p = p * key_mask[None]                     # drop padded token keys
        # Per-head softmax denominator via block-diagonal ones matmul, then
        # broadcast back over each segment in one shot.
        denom = jnp.dot(p.reshape(rows, m), bd,
                        preferred_element_type=jnp.float32
                        ).reshape(bs, n_pad, m)
        attn = p * pl.reciprocal(denom, approx=False)
        # Context: head structure restored automatically by the masked V_exp.
        ctx = jnp.einsum("bnm,bmc->bnc", attn, v_exp,
                         preferred_element_type=jnp.float32)          # (B,N,128)
        ctx = ctx.reshape(rows, C_PAD)

        # proj(50->50) + ReLU in padded 128->128 layout, then residual add.
        y = jnp.dot(ctx, w_proj[...],
                    preferred_element_type=jnp.float32) + b_proj[...]
        return jnp.maximum(y, 0.0) + x2

    x = x_ref[...].reshape(rows, C_PAD)
    x = block(x, ln_w1, ln_b1, qkv_w1, proj_w1, proj_b1)
    x = block(x, ln_w2, ln_b2, qkv_w2, proj_w2, proj_b2)
    o_ref[...] = x.reshape(bs, n_pad, C_PAD).astype(o_ref.dtype)


# --------------------------------------------------------------------------
# wrapper-side layout plumbing (zero padding, scale folding)
# --------------------------------------------------------------------------
def _pack_params(p):
    """PyTorch-layout params -> lane-aligned padded kernel operands."""
    ln_w = jnp.zeros((1, C_PAD), jnp.float32).at[0, :DIM].set(p["ln_w"])
    ln_b = jnp.zeros((1, C_PAD), jnp.float32).at[0, :DIM].set(p["ln_b"])

    # qkv weight (3*DIM, DIM): output channel o = t*50 + h*10 + d
    wq = p["qkv_w"].T.reshape(DIM, 3, NUM_HEADS, HEAD_DIM)           # [c,t,h,d]
    qkv = jnp.zeros((C_PAD, 3, H_PAD, HD_PAD), jnp.float32)
    qkv = qkv.at[:DIM, :, :NUM_HEADS, :HEAD_DIM].set(wq)
    qkv = qkv.at[:, 0].multiply(SCALE)      # fold qk scale into W_q (ReLU-safe)
    qkv = qkv.reshape(C_PAD, 3 * QKV_PAD)                             # (128,384)

    # proj weight (DIM, DIM): input channel i = h*10 + d
    wp = p["proj_w"].T.reshape(NUM_HEADS, HEAD_DIM, DIM)              # [h,d,o]
    proj = jnp.zeros((H_PAD, HD_PAD, C_PAD), jnp.float32)
    proj = proj.at[:NUM_HEADS, :HEAD_DIM, :DIM].set(wp)
    proj = proj.reshape(QKV_PAD, C_PAD)                               # (128,128)

    proj_b = jnp.zeros((1, C_PAD), jnp.float32).at[0, :DIM].set(p["proj_b"])
    return ln_w, ln_b, qkv, proj, proj_b


def _num_tensorcores():
    """Best-effort TensorCores-per-device (2 on v7x, 1 on v5e/v6e)."""
    try:
        dev = jax.devices()[0]
        for attr in ("num_cores", "core_count"):
            n = getattr(dev, attr, None)
            if n:
                return max(1, int(n))
    except Exception:
        pass
    return 1


def transformer_forward(x, params1, params2, *, num_programs=None):
    """x: (B, N, 50) float32 -> (B, N, 50); both blocks in one pallas_call."""
    B, N, C = x.shape
    assert C == DIM
    n_pad = ((N + 7) // 8) * 8              # sublane-align the token axis
    m = H_PAD * n_pad

    if num_programs is None:
        num_programs = _num_tensorcores()
    g = max(1, min(B, int(num_programs)))
    while B % g:
        g -= 1
    bs = B // g

    # Pad activations to a lane-dense (B, n_pad, 128) slab; channel padding
    # stays identically zero through the whole network, padded token rows are
    # neutralized by the key mask and sliced off at the end.
    xp = jnp.zeros((B, n_pad, C_PAD), x.dtype).at[:, :N, :DIM].set(x)

    # Constant masks (tiny, computed once on host side of the call).
    hvec = jnp.arange(H_PAD)[:, None, None]
    cvec = jnp.arange(C_PAD)[None, None, :]
    head_mask = ((cvec // HD_PAD) == hvec).astype(jnp.float32)        # (8,1,128)
    seg = jnp.arange(m) // n_pad
    bd = (seg[:, None] == seg[None, :]).astype(jnp.float32)           # (m, m)
    key_mask = ((jnp.arange(m) % n_pad) < N).astype(jnp.float32)[None, :]

    w1 = _pack_params(params1)
    w2 = _pack_params(params2)

    def cspec(arr):
        nd = arr.ndim
        return pl.BlockSpec(arr.shape, lambda i: (0,) * nd)

    kernel = functools.partial(_transformer_kernel, bs=bs, n_pad=n_pad)
    out = pl.pallas_call(
        kernel,
        out_shape=jax.ShapeDtypeStruct((B, n_pad, C_PAD), x.dtype),
        grid=(g,),
        in_specs=[pl.BlockSpec((bs, n_pad, C_PAD), lambda i: (i, 0, 0)),
                  cspec(head_mask), cspec(bd), cspec(key_mask)]
                 + [cspec(w) for w in (*w1, *w2)],
        out_specs=pl.BlockSpec((bs, n_pad, C_PAD), lambda i: (i, 0, 0)),
        compiler_params=pltpu.CompilerParams(
            dimension_semantics=("parallel",)),
    )(xp, head_mask, bd, key_mask, *w1, *w2)

    return out[:, :N, :DIM]


# ---------------- pure-JAX reference (for correctness check) ----------------
def _ref_block(x, p):
    res = x
    mean = jnp.mean(x, axis=-1, keepdims=True)
    var = jnp.mean((x - mean) ** 2, axis=-1, keepdims=True)
    xn = (x - mean) / jnp.sqrt(var + LN_EPS) * p["ln_w"] + p["ln_b"]
    B, N, C = x.shape
    qkv = jnp.maximum(xn @ p["qkv_w"].T, 0.0)                # (B,N,3C)
    qkv = qkv.reshape(B, N, 3, NUM_HEADS, HEAD_DIM).transpose(2, 0, 3, 1, 4)
    q, k, v = qkv[0], qkv[1], qkv[2]                         # (B,H,N,Hd)
    attn = jnp.einsum("bhnd,bhmd->bhnm", q, k) * SCALE
    attn = jax.nn.softmax(attn, axis=-1)
    ctx = jnp.einsum("bhnm,bhmd->bhnd", attn, v)             # (B,H,N,Hd)
    ctx = ctx.transpose(0, 2, 1, 3).reshape(B, N, C)
    y = jnp.maximum(ctx @ p["proj_w"].T + p["proj_b"], 0.0)
    return y + res


def _ref_transformer(x, p1, p2):
    return _ref_block(_ref_block(x, p1), p2)


def init_params(key):
    k1, k2, k3, k4, k5 = jax.random.split(key, 5)
    return {
        "ln_w": 1.0 + 0.1 * jax.random.normal(k4, (DIM,), jnp.float32),
        "ln_b": 0.1 * jax.random.normal(k5, (DIM,), jnp.float32),
        "qkv_w": 0.05 * jax.random.normal(k1, (3 * DIM, DIM), jnp.float32),
        "proj_w": 0.05 * jax.random.normal(k2, (DIM, DIM), jnp.float32),
        "proj_b": 0.05 * jax.random.normal(k3, (DIM,), jnp.float32),
    }


if __name__ == "__main__":
    key = jax.random.PRNGKey(0)
    kx, kp1, kp2 = jax.random.split(key, 3)

    B, N = 2, 8                              # small shapes consistent with dim=50
    x = jax.random.normal(kx, (B, N, DIM), jnp.float32)
    params1 = init_params(kp1)
    params2 = init_params(kp2)

    fwd = jax.jit(transformer_forward)
    out = jax.block_until_ready(fwd(x, params1, params2))

    ref = _ref_transformer(x, params1, params2)
    assert out.shape == (B, N, DIM)
    assert jnp.allclose(out, ref, rtol=1e-4, atol=1e-4), \
        float(jnp.max(jnp.abs(out - ref)))

    print("KERNEL_OK")
</pallas_src>

<mosaic_0001>
module attributes {stable_mosaic.version = 11 : i64} {
  func.func @_transformer_kernel(%arg0: i32, %arg1: memref<2x8x128xf32, #tpu.memory_space<vmem>>, %arg2: memref<8x1x128xf32, #tpu.memory_space<vmem>>, %arg3: memref<64x64xf32, #tpu.memory_space<vmem>>, %arg4: memref<1x64xf32, #tpu.memory_space<vmem>>, %arg5: memref<1x128xf32, #tpu.memory_space<vmem>>, %arg6: memref<1x128xf32, #tpu.memory_space<vmem>>, %arg7: memref<128x384xf32, #tpu.memory_space<vmem>>, %arg8: memref<128x128xf32, #tpu.memory_space<vmem>>, %arg9: memref<1x128xf32, #tpu.memory_space<vmem>>, %arg10: memref<1x128xf32, #tpu.memory_space<vmem>>, %arg11: memref<1x128xf32, #tpu.memory_space<vmem>>, %arg12: memref<128x384xf32, #tpu.memory_space<vmem>>, %arg13: memref<128x128xf32, #tpu.memory_space<vmem>>, %arg14: memref<1x128xf32, #tpu.memory_space<vmem>>, %arg15: memref<2x8x128xf32, #tpu.memory_space<vmem>>) attributes {dimension_semantics = [#tpu.dimension_semantics<parallel>], iteration_bounds = array<i64: 1>, scalar_prefetch = 0 : i64, scratch_operands = 0 : i64, tpu.core_type = #tpu.core_type<tc>, window_params = [{transform_indices = @transform_0, window_bounds = array<i64: 2, 8, 128>}, {pipeline_mode = #tpu.pipeline_mode<synchronous>, transform_indices = @transform_1, window_bounds = array<i64: 8, 1, 128>}, {pipeline_mode = #tpu.pipeline_mode<synchronous>, transform_indices = @transform_2, window_bounds = array<i64: 64, 64>}, {pipeline_mode = #tpu.pipeline_mode<synchronous>, transform_indices = @transform_3, window_bounds = array<i64: 1, 64>}, {pipeline_mode = #tpu.pipeline_mode<synchronous>, transform_indices = @transform_4, window_bounds = array<i64: 1, 128>}, {pipeline_mode = #tpu.pipeline_mode<synchronous>, transform_indices = @transform_5, window_bounds = array<i64: 1, 128>}, {pipeline_mode = #tpu.pipeline_mode<synchronous>, transform_indices = @transform_6, window_bounds = array<i64: 128, 384>}, {pipeline_mode = #tpu.pipeline_mode<synchronous>, transform_indices = @transform_7, window_bounds = array<i64: 128, 128>}, {pipeline_mode = #tpu.pipeline_mode<synchronous>, transform_indices = @transform_8, window_bounds = array<i64: 1, 128>}, {pipeline_mode = #tpu.pipeline_mode<synchronous>, transform_indices = @transform_9, window_bounds = array<i64: 1, 128>}, {pipeline_mode = #tpu.pipeline_mode<synchronous>, transform_indices = @transform_10, window_bounds = array<i64: 1, 128>}, {pipeline_mode = #tpu.pipeline_mode<synchronous>, transform_indices = @transform_11, window_bounds = array<i64: 128, 384>}, {pipeline_mode = #tpu.pipeline_mode<synchronous>, transform_indices = @transform_12, window_bounds = array<i64: 128, 128>}, {pipeline_mode = #tpu.pipeline_mode<synchronous>, transform_indices = @transform_13, window_bounds = array<i64: 1, 128>}, {transform_indices = @transform_14, window_bounds = array<i64: 2, 8, 128>}]} {
    %0 = tpu.iota {dimensions = array<i32: 1>} : vector<1x128xi32>
    %c50_i32 = arith.constant 50 : i32
    %1 = vector.broadcast %c50_i32 : i32 to vector<1x128xi32>
    %2 = arith.cmpi slt, %0, %1 : vector<1x128xi32>
    %3 = arith.extui %2 : vector<1x128xi1> to vector<1x128xi32>
    %4 = arith.sitofp %3 : vector<1x128xi32> to vector<1x128xf32>
    %c0 = arith.constant 0 : index
    %c0_0 = arith.constant 0 : index
    %c0_1 = arith.constant 0 : index
    %5 = vector.load %arg2[%c0, %c0_0, %c0_1] : memref<8x1x128xf32, #tpu.memory_space<vmem>>, vector<8x1x128xf32>
    %c0_2 = arith.constant 0 : index
    %c0_3 = arith.constant 0 : index
    %6 = vector.load %arg3[%c0_2, %c0_3] : memref<64x64xf32, #tpu.memory_space<vmem>>, vector<64x64xf32>
    %c0_4 = arith.constant 0 : index
    %c0_5 = arith.constant 0 : index
    %7 = vector.load %arg4[%c0_4, %c0_5] : memref<1x64xf32, #tpu.memory_space<vmem>>, vector<1x64xf32>
    %c0_6 = arith.constant 0 : index
    %c0_7 = arith.constant 0 : index
    %c0_8 = arith.constant 0 : index
    %8 = vector.load %arg1[%c0_6, %c0_7, %c0_8] : memref<2x8x128xf32, #tpu.memory_space<vmem>>, vector<2x8x128xf32>
    %9 = vector.shape_cast %8 : vector<2x8x128xf32> to vector<16x128xf32>
    %c0_9 = arith.constant 0 : index
    %c0_10 = arith.constant 0 : index
    %10 = vector.load %arg5[%c0_9, %c0_10] : memref<1x128xf32, #tpu.memory_space<vmem>>, vector<1x128xf32>
    %c0_11 = arith.constant 0 : index
    %c0_12 = arith.constant 0 : index
    %11 = vector.load %arg6[%c0_11, %c0_12] : memref<1x128xf32, #tpu.memory_space<vmem>>, vector<1x128xf32>
    %cst = arith.constant dense<0.000000e+00> : vector<16xf32>
    %12 = vector.multi_reduction <add>, %9, %cst [1] : vector<16x128xf32> to vector<16xf32>
    %13 = vector.shape_cast %12 : vector<16xf32> to vector<16x1xf32>
    %cst_13 = arith.constant 2.000000e-02 : f32
    %14 = vector.broadcast %cst_13 : f32 to vector<16x1xf32>
    %15 = arith.mulf %13, %14 : vector<16x1xf32>
    %16 = vector.broadcast %15 : vector<16x1xf32> to vector<16x128xf32>
    %17 = arith.subf %9, %16 : vector<16x128xf32>
    %18 = vector.broadcast %4 : vector<1x128xf32> to vector<16x128xf32>
    %19 = arith.mulf %17, %18 : vector<16x128xf32>
    %20 = arith.mulf %19, %19 : vector<16x128xf32>
    %cst_14 = arith.constant dense<0.000000e+00> : vector<16xf32>
    %21 = vector.multi_reduction <add>, %20, %cst_14 [1] : vector<16x128xf32> to vector<16xf32>
    %22 = vector.shape_cast %21 : vector<16xf32> to vector<16x1xf32>
    %cst_15 = arith.constant 2.000000e-02 : f32
    %23 = vector.broadcast %cst_15 : f32 to vector<16x1xf32>
    %24 = arith.mulf %22, %23 : vector<16x1xf32>
    %cst_16 = arith.constant 9.99999974E-6 : f32
    %25 = vector.broadcast %cst_16 : f32 to vector<16x1xf32>
    %26 = arith.addf %24, %25 : vector<16x1xf32>
    %27 = math.rsqrt %26 : vector<16x1xf32>
    %28 = vector.broadcast %27 : vector<16x1xf32> to vector<16x128xf32>
    %29 = arith.mulf %19, %28 : vector<16x128xf32>
    %30 = vector.broadcast %10 : vector<1x128xf32> to vector<16x128xf32>
    %31 = arith.mulf %29, %30 : vector<16x128xf32>
    %32 = vector.broadcast %11 : vector<1x128xf32> to vector<16x128xf32>
    %33 = arith.addf %31, %32 : vector<16x128xf32>
    %c0_17 = arith.constant 0 : index
    %c0_18 = arith.constant 0 : index
    %34 = vector.load %arg7[%c0_17, %c0_18] : memref<128x384xf32, #tpu.memory_space<vmem>>, vector<128x384xf32>
    %cst_19 = arith.constant dense<0.000000e+00> : vector<16x384xf32>
    %35 = tpu.matmul %33, %34, %cst_19 {dimension_numbers = #tpu.dot_dimension_numbers<[1], [0], [0], [1], [0, 0, 1, 1], [], []>} : vector<16x128xf32>, vector<128x384xf32>, vector<16x384xf32> -> vector<16x384xf32>
    %cst_20 = arith.constant 0.000000e+00 : f32
    %36 = vector.broadcast %cst_20 : f32 to vector<16x384xf32>
    %37 = arith.maximumf %35, %36 : vector<16x384xf32>
    %38 = vector.extract_strided_slice %37 {offsets = [0, 0], sizes = [16, 128], strides = [1, 1]} : vector<16x384xf32> to vector<16x128xf32>
    %39 = vector.shape_cast %38 : vector<16x128xf32> to vector<2x8x128xf32>
    %40 = vector.extract_strided_slice %37 {offsets = [0, 128], sizes = [16, 128], strides = [1, 1]} : vector<16x384xf32> to vector<16x128xf32>
    %41 = vector.shape_cast %40 : vector<16x128xf32> to vector<2x8x128xf32>
    %42 = vector.extract_strided_slice %37 {offsets = [0, 256], sizes = [16, 128], strides = [1, 1]} : vector<16x384xf32> to vector<16x128xf32>
    %43 = vector.shape_cast %42 : vector<16x128xf32> to vector<2x8x128xf32>
    %44 = vector.shape_cast %41 : vector<2x8x128xf32> to vector<2x1x8x128xf32>
    %45 = vector.shape_cast %5 : vector<8x1x128xf32> to vector<1x8x1x128xf32>
    %46 = vector.broadcast %44 : vector<2x1x8x128xf32> to vector<2x8x8x128xf32>
    %47 = vector.broadcast %45 : vector<1x8x1x128xf32> to vector<2x8x8x128xf32>
    %48 = arith.mulf %46, %47 : vector<2x8x8x128xf32>
    %49 = vector.shape_cast %48 : vector<2x8x8x128xf32> to vector<2x64x128xf32>
    %50 = vector.shape_cast %43 : vector<2x8x128xf32> to vector<2x1x8x128xf32>
    %51 = vector.shape_cast %5 : vector<8x1x128xf32> to vector<1x8x1x128xf32>
    %52 = vector.broadcast %50 : vector<2x1x8x128xf32> to vector<2x8x8x128xf32>
    %53 = vector.broadcast %51 : vector<1x8x1x128xf32> to vector<2x8x8x128xf32>
    %54 = arith.mulf %52, %53 : vector<2x8x8x128xf32>
    %55 = vector.shape_cast %54 : vector<2x8x8x128xf32> to vector<2x64x128xf32>
    "tpu.trace_start"() <{level = 10 : i32, message = "bnc,bmc->bnm"}> : () -> ()
    %cst_21 = arith.constant dense<0.000000e+00> : vector<2x8x64xf32>
    %56 = tpu.matmul %39, %49, %cst_21 {dimension_numbers = #tpu.dot_dimension_numbers<[2], [2], [1], [1], [0, 0, 0, 1, 1, 1], [0], [0]>} : vector<2x8x128xf32>, vector<2x64x128xf32>, vector<2x8x64xf32> -> vector<2x8x64xf32>
    "tpu.trace_stop"() : () -> ()
    %cst_22 = arith.constant dense<0xFF800000> : vector<2x8xf32>
    %57 = vector.multi_reduction <maximumf>, %56, %cst_22 [2] : vector<2x8x64xf32> to vector<2x8xf32>
    %58 = vector.shape_cast %57 : vector<2x8xf32> to vector<2x8x1xf32>
    %59 = vector.broadcast %58 : vector<2x8x1xf32> to vector<2x8x64xf32>
    %60 = arith.subf %56, %59 : vector<2x8x64xf32>
    %61 = math.exp %60 : vector<2x8x64xf32>
    %62 = vector.shape_cast %7 : vector<1x64xf32> to vector<1x1x64xf32>
    %63 = vector.broadcast %62 : vector<1x1x64xf32> to vector<2x8x64xf32>
    %64 = arith.mulf %61, %63 : vector<2x8x64xf32>
    %65 = vector.shape_cast %64 : vector<2x8x64xf32> to vector<16x64xf32>
    %cst_23 = arith.constant dense<0.000000e+00> : vector<16x64xf32>
    %66 = tpu.matmul %65, %6, %cst_23 {dimension_numbers = #tpu.dot_dimension_numbers<[1], [0], [0], [1], [0, 0, 1, 1], [], []>} : vector<16x64xf32>, vector<64x64xf32>, vector<16x64xf32> -> vector<16x64xf32>
    %67 = vector.shape_cast %66 : vector<16x64xf32> to vector<2x8x64xf32>
    %68 = tpu.reciprocal %67 : vector<2x8x64xf32> -> vector<2x8x64xf32>
    %69 = arith.mulf %64, %68 : vector<2x8x64xf32>
    "tpu.trace_start"() <{level = 10 : i32, message = "bnm,bmc->bnc"}> : () -> ()
    %cst_24 = arith.constant dense<0.000000e+00> : vector<2x8x128xf32>
    %70 = tpu.matmul %69, %55, %cst_24 {dimension_numbers = #tpu.dot_dimension_numbers<[2], [1], [1], [2], [0, 0, 0, 1, 1, 2], [0], [0]>} : vector<2x8x64xf32>, vector<2x64x128xf32>, vector<2x8x128xf32> -> vector<2x8x128xf32>
    "tpu.trace_stop"() : () -> ()
    %71 = vector.shape_cast %70 : vector<2x8x128xf32> to vector<16x128xf32>
    %c0_25 = arith.constant 0 : index
    %c0_26 = arith.constant 0 : index
    %72 = vector.load %arg8[%c0_25, %c0_26] : memref<128x128xf32, #tpu.memory_space<vmem>>, vector<128x128xf32>
    %cst_27 = arith.constant dense<0.000000e+00> : vector<16x128xf32>
    %73 = tpu.matmul %71, %72, %cst_27 {dimension_numbers = #tpu.dot_dimension_numbers<[1], [0], [0], [1], [0, 0, 1, 1], [], []>} : vector<16x128xf32>, vector<128x128xf32>, vector<16x128xf32> -> vector<16x128xf32>
    %c0_28 = arith.constant 0 : index
    %c0_29 = arith.constant 0 : index
    %74 = vector.load %arg9[%c0_28, %c0_29] : memref<1x128xf32, #tpu.memory_space<vmem>>, vector<1x128xf32>
    %75 = vector.broadcast %74 : vector<1x128xf32> to vector<16x128xf32>
    %76 = arith.addf %73, %75 : vector<16x128xf32>
    %cst_30 = arith.constant 0.000000e+00 : f32
    %77 = vector.broadcast %cst_30 : f32 to vector<16x128xf32>
    %78 = arith.maximumf %76, %77 : vector<16x128xf32>
    %79 = arith.addf %78, %9 : vector<16x128xf32>
    %c0_31 = arith.constant 0 : index
    %c0_32 = arith.constant 0 : index
    %80 = vector.load %arg10[%c0_31, %c0_32] : memref<1x128xf32, #tpu.memory_space<vmem>>, vector<1x128xf32>
    %c0_33 = arith.constant 0 : index
    %c0_34 = arith.constant 0 : index
    %81 = vector.load %arg11[%c0_33, %c0_34] : memref<1x128xf32, #tpu.memory_space<vmem>>, vector<1x128xf32>
    %cst_35 = arith.constant dense<0.000000e+00> : vector<16xf32>
    %82 = vector.multi_reduction <add>, %79, %cst_35 [1] : vector<16x128xf32> to vector<16xf32>
    %83 = vector.shape_cast %82 : vector<16xf32> to vector<16x1xf32>
    %cst_36 = arith.constant 2.000000e-02 : f32
    %84 = vector.broadcast %cst_36 : f32 to vector<16x1xf32>
    %85 = arith.mulf %83, %84 : vector<16x1xf32>
    %86 = vector.broadcast %85 : vector<16x1xf32> to vector<16x128xf32>
    %87 = arith.subf %79, %86 : vector<16x128xf32>
    %88 = vector.broadcast %4 : vector<1x128xf32> to vector<16x128xf32>
    %89 = arith.mulf %87, %88 : vector<16x128xf32>
    %90 = arith.mulf %89, %89 : vector<16x128xf32>
    %cst_37 = arith.constant dense<0.000000e+00> : vector<16xf32>
    %91 = vector.multi_reduction <add>, %90, %cst_37 [1] : vector<16x128xf32> to vector<16xf32>
    %92 = vector.shape_cast %91 : vector<16xf32> to vector<16x1xf32>
    %cst_38 = arith.constant 2.000000e-02 : f32
    %93 = vector.broadcast %cst_38 : f32 to vector<16x1xf32>
    %94 = arith.mulf %92, %93 : vector<16x1xf32>
    %cst_39 = arith.constant 9.99999974E-6 : f32
    %95 = vector.broadcast %cst_39 : f32 to vector<16x1xf32>
    %96 = arith.addf %94, %95 : vector<16x1xf32>
    %97 = math.rsqrt %96 : vector<16x1xf32>
    %98 = vector.broadcast %97 : vector<16x1xf32> to vector<16x128xf32>
    %99 = arith.mulf %89, %98 : vector<16x128xf32>
    %100 = vector.broadcast %80 : vector<1x128xf32> to vector<16x128xf32>
    %101 = arith.mulf %99, %100 : vector<16x128xf32>
    %102 = vector.broadcast %81 : vector<1x128xf32> to vector<16x128xf32>
    %103 = arith.addf %101, %102 : vector<16x128xf32>
    %c0_40 = arith.constant 0 : index
    %c0_41 = arith.constant 0 : index
    %104 = vector.load %arg12[%c0_40, %c0_41] : memref<128x384xf32, #tpu.memory_space<vmem>>, vector<128x384xf32>
    %cst_42 = arith.constant dense<0.000000e+00> : vector<16x384xf32>
    %105 = tpu.matmul %103, %104, %cst_42 {dimension_numbers = #tpu.dot_dimension_numbers<[1], [0], [0], [1], [0, 0, 1, 1], [], []>} : vector<16x128xf32>, vector<128x384xf32>, vector<16x384xf32> -> vector<16x384xf32>
    %cst_43 = arith.constant 0.000000e+00 : f32
    %106 = vector.broadcast %cst_43 : f32 to vector<16x384xf32>
    %107 = arith.maximumf %105, %106 : vector<16x384xf32>
    %108 = vector.extract_strided_slice %107 {offsets = [0, 0], sizes = [16, 128], strides = [1, 1]} : vector<16x384xf32> to vector<16x128xf32>
    %109 = vector.shape_cast %108 : vector<16x128xf32> to vector<2x8x128xf32>
    %110 = vector.extract_strided_slice %107 {offsets = [0, 128], sizes = [16, 128], strides = [1, 1]} : vector<16x384xf32> to vector<16x128xf32>
    %111 = vector.shape_cast %110 : vector<16x128xf32> to vector<2x8x128xf32>
    %112 = vector.extract_strided_slice %107 {offsets = [0, 256], sizes = [16, 128], strides = [1, 1]} : vector<16x384xf32> to vector<16x128xf32>
    %113 = vector.shape_cast %112 : vector<16x128xf32> to vector<2x8x128xf32>
    %114 = vector.shape_cast %111 : vector<2x8x128xf32> to vector<2x1x8x128xf32>
    %115 = vector.shape_cast %5 : vector<8x1x128xf32> to vector<1x8x1x128xf32>
    %116 = vector.broadcast %114 : vector<2x1x8x128xf32> to vector<2x8x8x128xf32>
    %117 = vector.broadcast %115 : vector<1x8x1x128xf32> to vector<2x8x8x128xf32>
    %118 = arith.mulf %116, %117 : vector<2x8x8x128xf32>
    %119 = vector.shape_cast %118 : vector<2x8x8x128xf32> to vector<2x64x128xf32>
    %120 = vector.shape_cast %113 : vector<2x8x128xf32> to vector<2x1x8x128xf32>
    %121 = vector.shape_cast %5 : vector<8x1x128xf32> to vector<1x8x1x128xf32>
    %122 = vector.broadcast %120 : vector<2x1x8x128xf32> to vector<2x8x8x128xf32>
    %123 = vector.broadcast %121 : vector<1x8x1x128xf32> to vector<2x8x8x128xf32>
    %124 = arith.mulf %122, %123 : vector<2x8x8x128xf32>
    %125 = vector.shape_cast %124 : vector<2x8x8x128xf32> to vector<2x64x128xf32>
    "tpu.trace_start"() <{level = 10 : i32, message = "bnc,bmc->bnm"}> : () -> ()
    %cst_44 = arith.constant dense<0.000000e+00> : vector<2x8x64xf32>
    %126 = tpu.matmul %109, %119, %cst_44 {dimension_numbers = #tpu.dot_dimension_numbers<[2], [2], [1], [1], [0, 0, 0, 1, 1, 1], [0], [0]>} : vector<2x8x128xf32>, vector<2x64x128xf32>, vector<2x8x64xf32> -> vector<2x8x64xf32>
    "tpu.trace_stop"() : () -> ()
    %cst_45 = arith.constant dense<0xFF800000> : vector<2x8xf32>
    %127 = vector.multi_reduction <maximumf>, %126, %cst_45 [2] : vector<2x8x64xf32> to vector<2x8xf32>
    %128 = vector.shape_cast %127 : vector<2x8xf32> to vector<2x8x1xf32>
    %129 = vector.broadcast %128 : vector<2x8x1xf32> to vector<2x8x64xf32>
    %130 = arith.subf %126, %129 : vector<2x8x64xf32>
    %131 = math.exp %130 : vector<2x8x64xf32>
    %132 = vector.shape_cast %7 : vector<1x64xf32> to vector<1x1x64xf32>
    %133 = vector.broadcast %132 : vector<1x1x64xf32> to vector<2x8x64xf32>
    %134 = arith.mulf %131, %133 : vector<2x8x64xf32>
    %135 = vector.shape_cast %134 : vector<2x8x64xf32> to vector<16x64xf32>
    %cst_46 = arith.constant dense<0.000000e+00> : vector<16x64xf32>
    %136 = tpu.matmul %135, %6, %cst_46 {dimension_numbers = #tpu.dot_dimension_numbers<[1], [0], [0], [1], [0, 0, 1, 1], [], []>} : vector<16x64xf32>, vector<64x64xf32>, vector<16x64xf32> -> vector<16x64xf32>
    %137 = vector.shape_cast %136 : vector<16x64xf32> to vector<2x8x64xf32>
    %138 = tpu.reciprocal %137 : vector<2x8x64xf32> -> vector<2x8x64xf32>
    %139 = arith.mulf %134, %138 : vector<2x8x64xf32>
    "tpu.trace_start"() <{level = 10 : i32, message = "bnm,bmc->bnc"}> : () -> ()
    %cst_47 = arith.constant dense<0.000000e+00> : vector<2x8x128xf32>
    %140 = tpu.matmul %139, %125, %cst_47 {dimension_numbers = #tpu.dot_dimension_numbers<[2], [1], [1], [2], [0, 0, 0, 1, 1, 2], [0], [0]>} : vector<2x8x64xf32>, vector<2x64x128xf32>, vector<2x8x128xf32> -> vector<2x8x128xf32>
    "tpu.trace_stop"() : () -> ()
    %141 = vector.shape_cast %140 : vector<2x8x128xf32> to vector<16x128xf32>
    %c0_48 = arith.constant 0 : index
    %c0_49 = arith.constant 0 : index
    %142 = vector.load %arg13[%c0_48, %c0_49] : memref<128x128xf32, #tpu.memory_space<vmem>>, vector<128x128xf32>
    %cst_50 = arith.constant dense<0.000000e+00> : vector<16x128xf32>
    %143 = tpu.matmul %141, %142, %cst_50 {dimension_numbers = #tpu.dot_dimension_numbers<[1], [0], [0], [1], [0, 0, 1, 1], [], []>} : vector<16x128xf32>, vector<128x128xf32>, vector<16x128xf32> -> vector<16x128xf32>
    %c0_51 = arith.constant 0 : index
    %c0_52 = arith.constant 0 : index
    %144 = vector.load %arg14[%c0_51, %c0_52] : memref<1x128xf32, #tpu.memory_space<vmem>>, vector<1x128xf32>
    %145 = vector.broadcast %144 : vector<1x128xf32> to vector<16x128xf32>
    %146 = arith.addf %143, %145 : vector<16x128xf32>
    %cst_53 = arith.constant 0.000000e+00 : f32
    %147 = vector.broadcast %cst_53 : f32 to vector<16x128xf32>
    %148 = arith.maximumf %146, %147 : vector<16x128xf32>
    %149 = arith.addf %148, %79 : vector<16x128xf32>
    %150 = vector.shape_cast %149 : vector<16x128xf32> to vector<2x8x128xf32>
    %c0_54 = arith.constant 0 : index
    %c0_55 = arith.constant 0 : index
    %c0_56 = arith.constant 0 : index
    %151 = vector.load %arg15[%c0_54, %c0_55, %c0_56] : memref<2x8x128xf32, #tpu.memory_space<vmem>>, vector<2x8x128xf32>
    tpu.vector_store %arg15[%c0_54, %c0_55, %c0_56], %150 {strides = array<i32>} : memref<2x8x128xf32, #tpu.memory_space<vmem>>, vector<2x8x128xf32>,
    return
  }
  func.func @transform_0(%arg0: i32) -> (i32, i32, i32) {
    %c0_i32 = arith.constant 0 : i32
    %c0_i32_0 = arith.constant 0 : i32
    %c0_i32_1 = arith.constant 0 : i32
    return %arg0, %c0_i32, %c0_i32_0 : i32, i32, i32
  }
  func.func @transform_1(%arg0: i32) -> (i32, i32, i32) {
    %c0_i32 = arith.constant 0 : i32
    %c0_i32_0 = arith.constant 0 : i32
    %c0_i32_1 = arith.constant 0 : i32
    %c0_i32_2 = arith.constant 0 : i32
    return %c0_i32, %c0_i32_0, %c0_i32_1 : i32, i32, i32
  }
  func.func @transform_2(%arg0: i32) -> (i32, i32) {
    %c0_i32 = arith.constant 0 : i32
    %c0_i32_0 = arith.constant 0 : i32
    %c0_i32_1 = arith.constant 0 : i32
    return %c0_i32, %c0_i32_0 : i32, i32
  }
  func.func @transform_3(%arg0: i32) -> (i32, i32) {
    %c0_i32 = arith.constant 0 : i32
    %c0_i32_0 = arith.constant 0 : i32
    %c0_i32_1 = arith.constant 0 : i32
    return %c0_i32, %c0_i32_0 : i32, i32
  }
  func.func @transform_4(%arg0: i32) -> (i32, i32) {
    %c0_i32 = arith.constant 0 : i32
    %c0_i32_0 = arith.constant 0 : i32
    %c0_i32_1 = arith.constant 0 : i32
    return %c0_i32, %c0_i32_0 : i32, i32
  }
  func.func @transform_5(%arg0: i32) -> (i32, i32) {
    %c0_i32 = arith.constant 0 : i32
    %c0_i32_0 = arith.constant 0 : i32
    %c0_i32_1 = arith.constant 0 : i32
    return %c0_i32, %c0_i32_0 : i32, i32
  }
  func.func @transform_6(%arg0: i32) -> (i32, i32) {
    %c0_i32 = arith.constant 0 : i32
    %c0_i32_0 = arith.constant 0 : i32
    %c0_i32_1 = arith.constant 0 : i32
    return %c0_i32, %c0_i32_0 : i32, i32
  }
  func.func @transform_7(%arg0: i32) -> (i32, i32) {
    %c0_i32 = arith.constant 0 : i32
    %c0_i32_0 = arith.constant 0 : i32
    %c0_i32_1 = arith.constant 0 : i32
    return %c0_i32, %c0_i32_0 : i32, i32
  }
  func.func @transform_8(%arg0: i32) -> (i32, i32) {
    %c0_i32 = arith.constant 0 : i32
    %c0_i32_0 = arith.constant 0 : i32
    %c0_i32_1 = arith.constant 0 : i32
    return %c0_i32, %c0_i32_0 : i32, i32
  }
  func.func @transform_9(%arg0: i32) -> (i32, i32) {
    %c0_i32 = arith.constant 0 : i32
    %c0_i32_0 = arith.constant 0 : i32
    %c0_i32_1 = arith.constant 0 : i32
    return %c0_i32, %c0_i32_0 : i32, i32
  }
  func.func @transform_10(%arg0: i32) -> (i32, i32) {
    %c0_i32 = arith.constant 0 : i32
    %c0_i32_0 = arith.constant 0 : i32
    %c0_i32_1 = arith.constant 0 : i32
    return %c0_i32, %c0_i32_0 : i32, i32
  }
  func.func @transform_11(%arg0: i32) -> (i32, i32) {
    %c0_i32 = arith.constant 0 : i32
    %c0_i32_0 = arith.constant 0 : i32
    %c0_i32_1 = arith.constant 0 : i32
    return %c0_i32, %c0_i32_0 : i32, i32
  }
  func.func @transform_12(%arg0: i32) -> (i32, i32) {
    %c0_i32 = arith.constant 0 : i32
    %c0_i32_0 = arith.constant 0 : i32
    %c0_i32_1 = arith.constant 0 : i32
    return %c0_i32, %c0_i32_0 : i32, i32
  }
  func.func @transform_13(%arg0: i32) -> (i32, i32) {
    %c0_i32 = arith.constant 0 : i32
    %c0_i32_0 = arith.constant 0 : i32
    %c0_i32_1 = arith.constant 0 : i32
    return %c0_i32, %c0_i32_0 : i32, i32
  }
  func.func @transform_14(%arg0: i32) -> (i32, i32, i32) {
    %c0_i32 = arith.constant 0 : i32
    %c0_i32_0 = arith.constant 0 : i32
    %c0_i32_1 = arith.constant 0 : i32
    return %arg0, %c0_i32, %c0_i32_0 : i32, i32, i32
  }
}

</mosaic_0001>

<llo_original>
// kernel: transformer_forward.1
$region0: #{transformer_forward.1}
  #allocation0 [shape = 'u32[]', space=smem, size = 0x4, offset = 0x4, fixed_abs, tag = 'smem constant byte address 0x4 - core index']
  #allocation1 [shape = 'u32[144,128]{1,0:T(1,128)}', space=vmem, size = 0x12000, scoped, tag = 'internal scratch']
  %s0 = inlined_call_operand.vmem [shape: f32[2,8,128], index: 0, kind: input, shape index: {}]
  %s1 = inlined_call_operand.vmem [shape: f32[8,1,128], index: 1, kind: input, shape index: {}]
  %s2 = inlined_call_operand.vmem [shape: f32[64,64], index: 2, kind: input, shape index: {}]
  %s3 = inlined_call_operand.vmem [shape: f32[1,64], index: 3, kind: input, shape index: {}]
  %s4 = inlined_call_operand.vmem [shape: f32[1,128], index: 4, kind: input, shape index: {}]
  %s5 = inlined_call_operand.vmem [shape: f32[1,128], index: 5, kind: input, shape index: {}]
  %s6 = inlined_call_operand.vmem [shape: f32[128,384], index: 6, kind: input, shape index: {}]
  %s7 = inlined_call_operand.vmem [shape: f32[128,128], index: 7, kind: input, shape index: {}]
  %s8 = inlined_call_operand.vmem [shape: f32[1,128], index: 8, kind: input, shape index: {}]
  %s9 = inlined_call_operand.vmem [shape: f32[1,128], index: 9, kind: input, shape index: {}]
  %s10 = inlined_call_operand.vmem [shape: f32[1,128], index: 10, kind: input, shape index: {}]
  %s11 = inlined_call_operand.vmem [shape: f32[128,384], index: 11, kind: input, shape index: {}]
  %s12 = inlined_call_operand.vmem [shape: f32[128,128], index: 12, kind: input, shape index: {}]
  %s13 = inlined_call_operand.vmem [shape: f32[1,128], index: 13, kind: input, shape index: {}]
  %s14 = inlined_call_operand.hbm [shape: f32[2,8,128], index: 14, kind: output, shape index: {}]
  %s15 = sld [smem:[#allocation0]]
  $region66: #{transformer_forward.1} parent=0
    _
  %s17 = ssub.s32 1, %s15
  %s18 = scalar_select 0, %s17, %s15
  $region1: #{transformer_forward.1} parent=0
    #allocation2 [shape = 'u8[8192]{0}', space=vmem, size = 0x2000, scoped, tag = 'output window, operand 0, single buffered']
    #allocation3 [shape = 's32[1]{0}', space=sflag, size = 0x4, scoped, tag = 'scoped memory for transformer_forward.1']
    %19 = vsyncpa [#allocation3], 0
    // Predicated region
    $region2: #{transformer_forward.1} parent=1 // pred_check
      _
    $region3: #{transformer_forward.1} parent=1 // pred_check_branch
      %21 = sbr.rel (0) target = $region5
    $region4: #{transformer_forward.1} parent=1 // pred_region
      _
    $region5: #{transformer_forward.1} parent=1 // pred_fallthru
      _
    // Predicated region
    $region6: #{transformer_forward.1} parent=1 // pred_check
      _
    $region7: #{transformer_forward.1} parent=1 // pred_check_branch
      %23 = sbr.rel (0) target = $region9
    $region8: #{transformer_forward.1} parent=1 // pred_region
      _
    $region9: #{transformer_forward.1} parent=1 // pred_fallthru
      _
    // Predicated region
    $region10: #{transformer_forward.1} parent=1 // pred_check
      _
    $region11: #{transformer_forward.1} parent=1 // pred_check_branch
      %25 = sbr.rel (0) target = $region13
    $region12: #{transformer_forward.1} parent=1 // pred_region
      _
    $region13: #{transformer_forward.1} parent=1 // pred_fallthru
      _
    // Predicated region
    $region14: #{transformer_forward.1} parent=1 // pred_check
      _
    $region15: #{transformer_forward.1} parent=1 // pred_check_branch
      %27 = sbr.rel (0) target = $region17
    $region16: #{transformer_forward.1} parent=1 // pred_region
      _
    $region17: #{transformer_forward.1} parent=1 // pred_fallthru
      _
    // Predicated region
    $region18: #{transformer_forward.1} parent=1 // pred_check
      _
    $region19: #{transformer_forward.1} parent=1 // pred_check_branch
      %29 = sbr.rel (0) target = $region21
    $region20: #{transformer_forward.1} parent=1 // pred_region
      _
    $region21: #{transformer_forward.1} parent=1 // pred_fallthru
      _
    // Predicated region
    $region22: #{transformer_forward.1} parent=1 // pred_check
      _
    $region23: #{transformer_forward.1} parent=1 // pred_check_branch
      %31 = sbr.rel (0) target = $region25
    $region24: #{transformer_forward.1} parent=1 // pred_region
      _
    $region25: #{transformer_forward.1} parent=1 // pred_fallthru
      _
    // Predicated region
    $region26: #{transformer_forward.1} parent=1 // pred_check
      _
    $region27: #{transformer_forward.1} parent=1 // pred_check_branch
      %33 = sbr.rel (0) target = $region29
    $region28: #{transformer_forward.1} parent=1 // pred_region
      _
    $region29: #{transformer_forward.1} parent=1 // pred_fallthru
      _
    // Predicated region
    $region30: #{transformer_forward.1} parent=1 // pred_check
      _
    $region31: #{transformer_forward.1} parent=1 // pred_check_branch
      %35 = sbr.rel (0) target = $region33
    $region32: #{transformer_forward.1} parent=1 // pred_region
      _
    $region33: #{transformer_forward.1} parent=1 // pred_fallthru
      _
    // Predicated region
    $region34: #{transformer_forward.1} parent=1 // pred_check
      _
    $region35: #{transformer_forward.1} parent=1 // pred_check_branch
      %37 = sbr.rel (0) target = $region37
    $region36: #{transformer_forward.1} parent=1 // pred_region
      _
    $region37: #{transformer_forward.1} parent=1 // pred_fallthru
      _
    // Predicated region
    $region38: #{transformer_forward.1} parent=1 // pred_check
      _
    $region39: #{transformer_forward.1} parent=1 // pred_check_branch
      %39 = sbr.rel (0) target = $region41
    $region40: #{transformer_forward.1} parent=1 // pred_region
      _
    $region41: #{transformer_forward.1} parent=1 // pred_fallthru
      _
    // Predicated region
    $region42: #{transformer_forward.1} parent=1 // pred_check
      _
    $region43: #{transformer_forward.1} parent=1 // pred_check_branch
      %41 = sbr.rel (0) target = $region45
    $region44: #{transformer_forward.1} parent=1 // pred_region
      _
    $region45: #{transformer_forward.1} parent=1 // pred_fallthru
      _
    // Predicated region
    $region46: #{transformer_forward.1} parent=1 // pred_check
      _
    $region47: #{transformer_forward.1} parent=1 // pred_check_branch
      %43 = sbr.rel (0) target = $region49
    $region48: #{transformer_forward.1} parent=1 // pred_region
      _
    $region49: #{transformer_forward.1} parent=1 // pred_fallthru
      _
    // Predicated region
    $region50: #{transformer_forward.1} parent=1 // pred_check
      _
    $region51: #{transformer_forward.1} parent=1 // pred_check_branch
      %45 = sbr.rel (0) target = $region53
    $region52: #{transformer_forward.1} parent=1 // pred_region
      _
    $region53: #{transformer_forward.1} parent=1 // pred_fallthru
      _
    // Predicated region
    $region54: #{transformer_forward.1} parent=1 // pred_check
      _
    $region55: #{transformer_forward.1} parent=1 // pred_check_branch
      %47 = sbr.rel (0) target = $region57
    $region56: #{transformer_forward.1} parent=1 // pred_region
      _
    $region57: #{transformer_forward.1} parent=1 // pred_fallthru
      _
    %v48 = vlaneseq
    %v49 = vand.u32 %v48, 127
    %vm50 = vcmp.lt.s32.totalorder %v49, 50
    %v51 = vsel %vm50, 1, 0
    %v52 = vcvt.s32.f32 %v51
    %v53 = vld [vmem:[%s1] sm:$0x1]
    %v54 = vld [vmem:[%s1 + $0x1] sm:$0x1]
    %v55 = vld [vmem:[%s1 + $0x2] sm:$0x1]
    %v56 = vld [vmem:[%s1 + $0x3] sm:$0x1]
    %v57 = vld [vmem:[%s1 + $0x4] sm:$0x1]
    %v58 = vld [vmem:[%s1 + $0x5] sm:$0x1]
    %v59 = vld [vmem:[%s1 + $0x6] sm:$0x1]
    %v60 = vld [vmem:[%s1 + $0x7] sm:$0x1]
    %v61 = vld [vmem:[%s2] sm:$0xff]
    %v62 = vld [vmem:[%s2 + $0x8] sm:$0xff]
    %v63 = vld [vmem:[%s2 + $0x10] sm:$0xff]
    %v64 = vld [vmem:[%s2 + $0x18] sm:$0xff]
    %v65 = vld [vmem:[%s2 + $0x20] sm:$0xff]
    %v66 = vld [vmem:[%s2 + $0x28] sm:$0xff]
    %v67 = vld [vmem:[%s2 + $0x30] sm:$0xff]
    %v68 = vld [vmem:[%s2 + $0x38] sm:$0xff]
    %v69 = vld [vmem:[%s3] sm:$0x1]
    %v70 = vld [vmem:[%s0] sm:$0xff]
    %v71 = vld [vmem:[%s0 + $0x8] sm:$0xff]
    %v72 = vld [vmem:[%s4] sm:$0x1]
    %v73 = vld [vmem:[%s5] sm:$0x1]
    %74 = vadd.xlane.f32.xlu0 %v70
    %v75 = vpop.xlane.xlu0 %74
    %76 = vadd.xlane.f32.xlu0 %v71
    %v77 = vpop.xlane.xlu0 %76
    %v78 = vmul.f32 %v75, 0.02
    %v79 = vmul.f32 %v77, 0.02
    %v80 = vsub.f32 %v70, %v78
    %v81 = vsub.f32 %v71, %v79
    %v82 = vmul.f32 %v80, %v52
    %v83 = vmul.f32 %v81, %v52
    %v84 = vmul.f32 %v82, %v82
    %v85 = vmul.f32 %v83, %v83
    %86 = vadd.xlane.f32.xlu0 %v84
    %v87 = vpop.xlane.xlu0 %86
    %88 = vadd.xlane.f32.xlu0 %v85
    %v89 = vpop.xlane.xlu0 %88
    %v90 = vmul.f32 %v87, 0.02
    %v91 = vmul.f32 %v89, 0.02
    %v92 = vadd.f32 %v90, 1e-05
    %v93 = vadd.f32 %v91, 1e-05
    %v94 = vrsqrt.pop %v92
    %v95 = vrsqrt.pop %v93
    %v96 = vmul.f32 %v82, %v94
    %v97 = vmul.f32 %v83, %v95
    %v99 = vlaneseq
    %v100 = vshrl.u32 %v99, 7
    %v101 = vsub.s32 0, %v100
    %v102 = vrot.slane %v72, %v101
    %v104 = vmul.f32 %v96, %v102
    %v105 = vmul.f32 %v97, %v102
    %v107 = vlaneseq
    %v108 = vshrl.u32 %v107, 7
    %v109 = vsub.s32 0, %v108
    %v110 = vrot.slane %v73, %v109
    %v112 = vadd.f32 %v104, %v110
    %v113 = vadd.f32 %v105, %v110
    %v114 = vld [vmem:[%s6] sm:$0xff]
    %v115 = vld [vmem:[%s6 + $0x8] sm:$0xff]
    %v116 = vld [vmem:[%s6 + $0x10] sm:$0xff]
    %v117 = vld [vmem:[%s6 + $0x18] sm:$0xff]
    %v118 = vld [vmem:[%s6 + $0x20] sm:$0xff]
    %v119 = vld [vmem:[%s6 + $0x28] sm:$0xff]
    %v120 = vld [vmem:[%s6 + $0x30] sm:$0xff]
    %v121 = vld [vmem:[%s6 + $0x38] sm:$0xff]
    %v122 = vld [vmem:[%s6 + $0x40] sm:$0xff]
    %v123 = vld [vmem:[%s6 + $0x48] sm:$0xff]
    %v124 = vld [vmem:[%s6 + $0x50] sm:$0xff]
    %v125 = vld [vmem:[%s6 + $0x58] sm:$0xff]
    %v126 = vld [vmem:[%s6 + $0x60] sm:$0xff]
    %v127 = vld [vmem:[%s6 + $0x68] sm:$0xff]
    %v128 = vld [vmem:[%s6 + $0x70] sm:$0xff]
    %v129 = vld [vmem:[%s6 + $0x78] sm:$0xff]
    %v130 = vld [vmem:[%s6 + $0x80] sm:$0xff]
    %v131 = vld [vmem:[%s6 + $0x88] sm:$0xff]
    %v132 = vld [vmem:[%s6 + $0x90] sm:$0xff]
    %v133 = vld [vmem:[%s6 + $0x98] sm:$0xff]
    %v134 = vld [vmem:[%s6 + $0xa0] sm:$0xff]
    %v135 = vld [vmem:[%s6 + $0xa8] sm:$0xff]
    %v136 = vld [vmem:[%s6 + $0xb0] sm:$0xff]
    %v137 = vld [vmem:[%s6 + $0xb8] sm:$0xff]
    %v138 = vld [vmem:[%s6 + $0xc0] sm:$0xff]
    %v139 = vld [vmem:[%s6 + $0xc8] sm:$0xff]
    %v140 = vld [vmem:[%s6 + $0xd0] sm:$0xff]
    %v141 = vld [vmem:[%s6 + $0xd8] sm:$0xff]
    %v142 = vld [vmem:[%s6 + $0xe0] sm:$0xff]
    %v143 = vld [vmem:[%s6 + $0xe8] sm:$0xff]
    %v144 = vld [vmem:[%s6 + $0xf0] sm:$0xff]
    %v145 = vld [vmem:[%s6 + $0xf8] sm:$0xff]
    %v146 = vld [vmem:[%s6 + $0x100] sm:$0xff]
    %v147 = vld [vmem:[%s6 + $0x108] sm:$0xff]
    %v148 = vld [vmem:[%s6 + $0x110] sm:$0xff]
    %v149 = vld [vmem:[%s6 + $0x118] sm:$0xff]
    %v150 = vld [vmem:[%s6 + $0x120] sm:$0xff]
    %v151 = vld [vmem:[%s6 + $0x128] sm:$0xff]
    %v152 = vld [vmem:[%s6 + $0x130] sm:$0xff]
    %v153 = vld [vmem:[%s6 + $0x138] sm:$0xff]
    %v154 = vld [vmem:[%s6 + $0x140] sm:$0xff]
    %v155 = vld [vmem:[%s6 + $0x148] sm:$0xff]
    %v156 = vld [vmem:[%s6 + $0x150] sm:$0xff]
    %v157 = vld [vmem:[%s6 + $0x158] sm:$0xff]
    %v158 = vld [vmem:[%s6 + $0x160] sm:$0xff]
    %v159 = vld [vmem:[%s6 + $0x168] sm:$0xff]
    %v160 = vld [vmem:[%s6 + $0x170] sm:$0xff]
    %v161 = vld [vmem:[%s6 + $0x178] sm:$0xff]
    %162 = vmatprep.subr.mxu0 %v115
    %163 = vmatpush1.msra.mxu0 %v114
    %164 = vmatprep.subr.mxu0 %v118
    %165 = vmatpush1.msra.mxu0 %v117
    %166 = vmatprep.subr.mxu0 %v121
    %167 = vmatpush1.msra.mxu0 %v120
    %168 = vmatprep.subr.mxu0 %v124
    %169 = vmatpush1.msra.mxu0 %v123
    %170 = vmatprep.subr.mxu0 %v127
    %171 = vmatpush1.msra.mxu0 %v126
    %172 = vmatprep.subr.mxu0 %v130
    %173 = vmatpush1.msra.mxu0 %v129
    %174 = vmatprep.subr.mxu0 %v133
    %175 = vmatpush1.msra.mxu0 %v132
    %176 = vmatprep.subr.mxu0 %v136
    %177 = vmatpush1.msra.mxu0 %v135
    %178 = vmatprep.subr.mxu0 %v139
    %179 = vmatpush1.msra.mxu0 %v138
    %180 = vmatprep.subr.mxu0 %v142
    %181 = vmatpush1.msra.mxu0 %v141
    %182 = vmatprep.subr.mxu0 %v145
    %183 = vmatpush1.msra.mxu0 %v144
    %184 = vmatprep.subr.mxu0 %v148
    %185 = vmatpush1.msra.mxu0 %v147
    %186 = vmatprep.subr.mxu0 %v151
    %187 = vmatpush1.msra.mxu0 %v150
    %188 = vmatprep.subr.mxu0 %v154
    %189 = vmatpush1.msra.mxu0 %v153
    %190 = vmatprep.subr.mxu0 %v157
    %191 = vmatpush1.msra.mxu0 %v156
    %192 = vmatprep.subr.mxu0 %v160
    %193 = vmatpush1.msra.mxu0 %v159
    %194 = vmatprep.subr.mxu0 0.0
    %195 = vmatpush1.msra.mxu0 0.0
    %196 = vmatprep.subr.mxu0 0.0
    %197 = vmatpush1.msra.mxu0 0.0
    %198 = vmatprep.subr.mxu0 0.0
    %199 = vmatpush1.msra.mxu0 0.0
    %200 = vmatprep.subr.mxu0 0.0
    %201 = vmatpush1.msra.mxu0 0.0
    %202 = vmatprep.subr.mxu0 0.0
    %203 = vmatpush1.msra.mxu0 0.0
    %204 = vmatprep.subr.mxu0 0.0
    %205 = vmatpush1.msra.mxu0 0.0
    %206 = vmatprep.subr.mxu0 0.0
    %207 = vmatpush1.msra.mxu0 0.0
    %208 = vmatprep.subr.mxu0 0.0
    %209 = vmatpush1.msra.mxu0 0.0
    %210 = vmatprep.subr.mxu0 0.0
    %211 = vmatpush1.msra.mxu0 0.0
    %212 = vmatprep.subr.mxu0 0.0
    %213 = vmatpush1.msra.mxu0 0.0
    %214 = vmatprep.subr.mxu0 0.0
    %215 = vmatpush1.msra.mxu0 0.0
    %216 = vmatprep.subr.mxu0 0.0
    %217 = vmatpush1.msra.mxu0 0.0
    %218 = vmatprep.subr.mxu0 0.0
    %219 = vmatpush1.msra.mxu0 0.0
    %220 = vmatprep.subr.mxu0 0.0
    %221 = vmatpush1.msra.mxu0 0.0
    %222 = vmatprep.subr.mxu0 0.0
    %223 = vmatpush1.msra.mxu0 0.0
    %224 = vmatprep.subr.mxu0 0.0
    %225 = vmatpush1.msra.mxu0 0.0
    %226 = vmatprep.mubr.f32.mxu0 0.0
    %227 = vmatmul.mubr.f32.gmra.mrb[0].mxu0 %v112
    %v228 = vpop.f32.mrb[0].mxu0
    %v229 = vadd.f32 0.0, %v228
    %v230 = vpop.f32.mrb[0].mxu0
    %v231 = vadd.f32 0.0, %v230
    %232 = vmatprep.mubr.f32.mxu0 0.0
    %233 = vmatmul.mubr.f32.gmra.mrb[0].mxu0 %v113
    %v234 = vpop.f32.mrb[0].mxu0
    %v235 = vadd.f32 0.0, %v234
    %v236 = vpop.f32.mrb[0].mxu0
    %v237 = vadd.f32 0.0, %v236
    %238 = vdwg.mxu0
    %239 = vmatprep.subr.mxu0 0.0
    %240 = vmatpush1.msra.mxu0 %v116
    %241 = vmatprep.subr.mxu0 0.0
    %242 = vmatpush1.msra.mxu0 %v119
    %243 = vmatprep.subr.mxu0 0.0
    %244 = vmatpush1.msra.mxu0 %v122
    %245 = vmatprep.subr.mxu0 0.0
    %246 = vmatpush1.msra.mxu0 %v125
    %247 = vmatprep.subr.mxu0 0.0
    %248 = vmatpush1.msra.mxu0 %v128
    %249 = vmatprep.subr.mxu0 0.0
    %250 = vmatpush1.msra.mxu0 %v131
    %251 = vmatprep.subr.mxu0 0.0
    %252 = vmatpush1.msra.mxu0 %v134
    %253 = vmatprep.subr.mxu0 0.0
    %254 = vmatpush1.msra.mxu0 %v137
    %255 = vmatprep.subr.mxu0 0.0
    %256 = vmatpush1.msra.mxu0 %v140
    %257 = vmatprep.subr.mxu0 0.0
    %258 = vmatpush1.msra.mxu0 %v143
    %259 = vmatprep.subr.mxu0 0.0
    %260 = vmatpush1.msra.mxu0 %v146
    %261 = vmatprep.subr.mxu0 0.0
    %262 = vmatpush1.msra.mxu0 %v149
    %263 = vmatprep.subr.mxu0 0.0
    %264 = vmatpush1.msra.mxu0 %v152
    %265 = vmatprep.subr.mxu0 0.0
    %266 = vmatpush1.msra.mxu0 %v155
    %267 = vmatprep.subr.mxu0 0.0
    %268 = vmatpush1.msra.mxu0 %v158
    %269 = vmatprep.subr.mxu0 0.0
    %270 = vmatpush1.msra.mxu0 %v161
    %271 = vmatprep.subr.mxu0 0.0
    %272 = vmatpush1.msra.mxu0 0.0
    %273 = vmatprep.subr.mxu0 0.0
    %274 = vmatpush1.msra.mxu0 0.0
    %275 = vmatprep.subr.mxu0 0.0
    %276 = vmatpush1.msra.mxu0 0.0
    %277 = vmatprep.subr.mxu0 0.0
    %278 = vmatpush1.msra.mxu0 0.0
    %279 = vmatprep.subr.mxu0 0.0
    %280 = vmatpush1.msra.mxu0 0.0
    %281 = vmatprep.subr.mxu0 0.0
    %282 = vmatpush1.msra.mxu0 0.0
    %283 = vmatprep.subr.mxu0 0.0
    %284 = vmatpush1.msra.mxu0 0.0
    %285 = vmatprep.subr.mxu0 0.0
    %286 = vmatpush1.msra.mxu0 0.0
    %287 = vmatprep.subr.mxu0 0.0
    %288 = vmatpush1.msra.mxu0 0.0
    %289 = vmatprep.subr.mxu0 0.0
    %290 = vmatpush1.msra.mxu0 0.0
    %291 = vmatprep.subr.mxu0 0.0
    %292 = vmatpush1.msra.mxu0 0.0
    %293 = vmatprep.subr.mxu0 0.0
    %294 = vmatpush1.msra.mxu0 0.0
    %295 = vmatprep.subr.mxu0 0.0
    %296 = vmatpush1.msra.mxu0 0.0
    %297 = vmatprep.subr.mxu0 0.0
    %298 = vmatpush1.msra.mxu0 0.0
    %299 = vmatprep.subr.mxu0 0.0
    %300 = vmatpush1.msra.mxu0 0.0
    %301 = vmatprep.subr.mxu0 0.0
    %302 = vmatpush1.msra.mxu0 0.0
    %303 = vmatprep.mubr.f32.mxu0 0.0
    %304 = vmatmul.mubr.f32.gmra.mrb[0].mxu0 %v112
    %v305 = vpop.f32.mrb[0].mxu0
    %v306 = vadd.f32 0.0, %v305
    %v307 = vpop.f32.mrb[0].mxu0
    %308 = vmatprep.mubr.f32.mxu0 0.0
    %309 = vmatmul.mubr.f32.gmra.mrb[0].mxu0 %v113
    %v310 = vpop.f32.mrb[0].mxu0
    %v311 = vadd.f32 0.0, %v310
    %v312 = vpop.f32.mrb[0].mxu0
    %313 = vdwg.mxu0
    %v314 = vmax.f32 %v229, 0.0
    %v315 = vmax.f32 %v231, 0.0
    %v316 = vmax.f32 %v306, 0.0
    %v317 = vmax.f32 %v235, 0.0
    %v318 = vmax.f32 %v237, 0.0
    %v319 = vmax.f32 %v311, 0.0
    %v328 = vlaneseq
    %v329 = vshrl.u32 %v328, 7
    %v330 = vsub.s32 0, %v329
    %v331 = vrot.slane %v53, %v330
    %v332 = vlaneseq
    %v333 = vshrl.u32 %v332, 7
    %v334 = vsub.s32 0, %v333
    %v335 = vrot.slane %v54, %v334
    %v336 = vlaneseq
    %v337 = vshrl.u32 %v336, 7
    %v338 = vsub.s32 0, %v337
    %v339 = vrot.slane %v55, %v338
    %v340 = vlaneseq
    %v341 = vshrl.u32 %v340, 7
    %v342 = vsub.s32 0, %v341
    %v343 = vrot.slane %v56, %v342
    %v344 = vlaneseq
    %v345 = vshrl.u32 %v344, 7
    %v346 = vsub.s32 0, %v345
    %v347 = vrot.slane %v57, %v346
    %v348 = vlaneseq
    %v349 = vshrl.u32 %v348, 7
    %v350 = vsub.s32 0, %v349
    %v351 = vrot.slane %v58, %v350
    %v352 = vlaneseq
    %v353 = vshrl.u32 %v352, 7
    %v354 = vsub.s32 0, %v353
    %v355 = vrot.slane %v59, %v354
    %v356 = vlaneseq
    %v357 = vshrl.u32 %v356, 7
    %v358 = vsub.s32 0, %v357
    %v359 = vrot.slane %v60, %v358
    %v368 = vmul.f32 %v315, %v331
    %v369 = vmul.f32 %v315, %v335
    %v370 = vmul.f32 %v315, %v339
    %v371 = vmul.f32 %v315, %v343
    %v372 = vmul.f32 %v315, %v347
    %v373 = vmul.f32 %v315, %v351
    %v374 = vmul.f32 %v315, %v355
    %v375 = vmul.f32 %v315, %v359
    %v376 = vmul.f32 %v318, %v331
    %v377 = vmul.f32 %v318, %v335
    %v378 = vmul.f32 %v318, %v339
    %v379 = vmul.f32 %v318, %v343
    %v380 = vmul.f32 %v318, %v347
    %v381 = vmul.f32 %v318, %v351
    %v382 = vmul.f32 %v318, %v355
    %v383 = vmul.f32 %v318, %v359
    %v384 = vmul.f32 %v316, %v331
    %v385 = vmul.f32 %v316, %v335
    %v386 = vmul.f32 %v316, %v339
    %v387 = vmul.f32 %v316, %v343
    %v388 = vmul.f32 %v316, %v347
    %v389 = vmul.f32 %v316, %v351
    %v390 = vmul.f32 %v316, %v355
    %v391 = vmul.f32 %v316, %v359
    %v392 = vmul.f32 %v319, %v331
    %v393 = vmul.f32 %v319, %v335
    %v394 = vmul.f32 %v319, %v339
    %v395 = vmul.f32 %v319, %v343
    %v396 = vmul.f32 %v319, %v347
    %v397 = vmul.f32 %v319, %v351
    %v398 = vmul.f32 %v319, %v355
    %v399 = vmul.f32 %v319, %v359
    %400 = vmatprep.subr.mxu0 0.0
    %401 = vmatpush1.xpose.msra.mxu0 %v368
    %402 = vmatprep.subr.mxu0 0.0
    %403 = vmatpush1.xpose.msra.mxu0 %v369
    %404 = vmatprep.subr.mxu0 0.0
    %405 = vmatpush1.xpose.msra.mxu0 %v370
    %406 = vmatprep.subr.mxu0 0.0
    %407 = vmatpush1.xpose.msra.mxu0 %v371
    %408 = vmatprep.subr.mxu0 0.0
    %409 = vmatpush1.xpose.msra.mxu0 %v372
    %410 = vmatprep.subr.mxu0 0.0
    %411 = vmatpush1.xpose.msra.mxu0 %v373
    %412 = vmatprep.subr.mxu0 0.0
    %413 = vmatpush1.xpose.msra.mxu0 %v374
    %414 = vmatprep.subr.mxu0 0.0
    %415 = vmatpush1.xpose.msra.mxu0 %v375
    %416 = vmatprep.subr.mxu0 0.0
    %417 = vmatpush1.xpose.msra.mxu0 0.0
    %418 = vmatprep.subr.mxu0 0.0
    %419 = vmatpush1.xpose.msra.mxu0 0.0
    %420 = vmatprep.subr.mxu0 0.0
    %421 = vmatpush1.xpose.msra.mxu0 0.0
    %422 = vmatprep.subr.mxu0 0.0
    %423 = vmatpush1.xpose.msra.mxu0 0.0
    %424 = vmatprep.subr.mxu0 0.0
    %425 = vmatpush1.xpose.msra.mxu0 0.0
    %426 = vmatprep.subr.mxu0 0.0
    %427 = vmatpush1.xpose.msra.mxu0 0.0
    %428 = vmatprep.subr.mxu0 0.0
    %429 = vmatpush1.xpose.msra.mxu0 0.0
    %430 = vmatprep.subr.mxu0 0.0
    %431 = vmatpush1.xpose.msra.mxu0 0.0
    %432 = vmatprep.subr.mxu0 0.0
    %433 = vmatpush1.xpose.msra.mxu0 0.0
    %434 = vmatprep.subr.mxu0 0.0
    %435 = vmatpush1.xpose.msra.mxu0 0.0
    %436 = vmatprep.subr.mxu0 0.0
    %437 = vmatpush1.xpose.msra.mxu0 0.0
    %438 = vmatprep.subr.mxu0 0.0
    %439 = vmatpush1.xpose.msra.mxu0 0.0
    %440 = vmatprep.subr.mxu0 0.0
    %441 = vmatpush1.xpose.msra.mxu0 0.0
    %442 = vmatprep.subr.mxu0 0.0
    %443 = vmatpush1.xpose.msra.mxu0 0.0
    %444 = vmatprep.subr.mxu0 0.0
    %445 = vmatpush1.xpose.msra.mxu0 0.0
    %446 = vmatprep.subr.mxu0 0.0
    %447 = vmatpush1.xpose.msra.mxu0 0.0
    %448 = vmatprep.subr.mxu0 0.0
    %449 = vmatpush1.xpose.msra.mxu0 0.0
    %450 = vmatprep.subr.mxu0 0.0
    %451 = vmatpush1.xpose.msra.mxu0 0.0
    %452 = vmatprep.subr.mxu0 0.0
    %453 = vmatpush1.xpose.msra.mxu0 0.0
    %454 = vmatprep.subr.mxu0 0.0
    %455 = vmatpush1.xpose.msra.mxu0 0.0
    %456 = vmatprep.subr.mxu0 0.0
    %457 = vmatpush1.xpose.msra.mxu0 0.0
    %458 = vmatprep.subr.mxu0 0.0
    %459 = vmatpush1.xpose.msra.mxu0 0.0
    %460 = vmatprep.subr.mxu0 0.0
    %461 = vmatpush1.xpose.msra.mxu0 0.0
    %462 = vmatprep.subr.mxu0 0.0
    %463 = vmatpush1.xpose.msra.mxu0 0.0
    %464 = vmatprep.mubr.f32.mxu0 0.0
    %465 = vmatmul.mubr.f32.gmra.mrb[0].mxu0 %v314
    %v466 = vpop.f32.mrb[0].mxu0
    %v467 = vadd.f32 0.0, %v466
    %v468 = vpop.f32.mrb[0].mxu0
    %469 = vdwg.mxu0
    %470 = vmatprep.subr.mxu0 0.0
    %471 = vmatpush1.xpose.msra.mxu0 %v376
    %472 = vmatprep.subr.mxu0 0.0
    %473 = vmatpush1.xpose.msra.mxu0 %v377
    %474 = vmatprep.subr.mxu0 0.0
    %475 = vmatpush1.xpose.msra.mxu0 %v378
    %476 = vmatprep.subr.mxu0 0.0
    %477 = vmatpush1.xpose.msra.mxu0 %v379
    %478 = vmatprep.subr.mxu0 0.0
    %479 = vmatpush1.xpose.msra.mxu0 %v380
    %480 = vmatprep.subr.mxu0 0.0
    %481 = vmatpush1.xpose.msra.mxu0 %v381
    %482 = vmatprep.subr.mxu0 0.0
    %483 = vmatpush1.xpose.msra.mxu0 %v382
    %484 = vmatprep.subr.mxu0 0.0
    %485 = vmatpush1.xpose.msra.mxu0 %v383
    %486 = vmatprep.subr.mxu0 0.0
    %487 = vmatpush1.xpose.msra.mxu0 0.0
    %488 = vmatprep.subr.mxu0 0.0
    %489 = vmatpush1.xpose.msra.mxu0 0.0
    %490 = vmatprep.subr.mxu0 0.0
    %491 = vmatpush1.xpose.msra.mxu0 0.0
    %492 = vmatprep.subr.mxu0 0.0
    %493 = vmatpush1.xpose.msra.mxu0 0.0
    %494 = vmatprep.subr.mxu0 0.0
    %495 = vmatpush1.xpose.msra.mxu0 0.0
    %496 = vmatprep.subr.mxu0 0.0
    %497 = vmatpush1.xpose.msra.mxu0 0.0
    %498 = vmatprep.subr.mxu0 0.0
    %499 = vmatpush1.xpose.msra.mxu0 0.0
    %500 = vmatprep.subr.mxu0 0.0
    %501 = vmatpush1.xpose.msra.mxu0 0.0
    %502 = vmatprep.subr.mxu0 0.0
    %503 = vmatpush1.xpose.msra.mxu0 0.0
    %504 = vmatprep.subr.mxu0 0.0
    %505 = vmatpush1.xpose.msra.mxu0 0.0
    %506 = vmatprep.subr.mxu0 0.0
    %507 = vmatpush1.xpose.msra.mxu0 0.0
    %508 = vmatprep.subr.mxu0 0.0
    %509 = vmatpush1.xpose.msra.mxu0 0.0
    %510 = vmatprep.subr.mxu0 0.0
    %511 = vmatpush1.xpose.msra.mxu0 0.0
    %512 = vmatprep.subr.mxu0 0.0
    %513 = vmatpush1.xpose.msra.mxu0 0.0
    %514 = vmatprep.subr.mxu0 0.0
    %515 = vmatpush1.xpose.msra.mxu0 0.0
    %516 = vmatprep.subr.mxu0 0.0
    %517 = vmatpush1.xpose.msra.mxu0 0.0
    %518 = vmatprep.subr.mxu0 0.0
    %519 = vmatpush1.xpose.msra.mxu0 0.0
    %520 = vmatprep.subr.mxu0 0.0
    %521 = vmatpush1.xpose.msra.mxu0 0.0
    %522 = vmatprep.subr.mxu0 0.0
    %523 = vmatpush1.xpose.msra.mxu0 0.0
    %524 = vmatprep.subr.mxu0 0.0
    %525 = vmatpush1.xpose.msra.mxu0 0.0
    %526 = vmatprep.subr.mxu0 0.0
    %527 = vmatpush1.xpose.msra.mxu0 0.0
    %528 = vmatprep.subr.mxu0 0.0
    %529 = vmatpush1.xpose.msra.mxu0 0.0
    %530 = vmatprep.subr.mxu0 0.0
    %531 = vmatpush1.xpose.msra.mxu0 0.0
    %532 = vmatprep.subr.mxu0 0.0
    %533 = vmatpush1.xpose.msra.mxu0 0.0
    %534 = vmatprep.mubr.f32.mxu0 0.0
    %535 = vmatmul.mubr.f32.gmra.mrb[0].mxu0 %v317
    %v536 = vpop.f32.mrb[0].mxu0
    %v537 = vadd.f32 0.0, %v536
    %v538 = vpop.f32.mrb[0].mxu0
    %539 = vdwg.mxu0
    %vm540 = vcmask 523264
    %v541 = vsel %vm540, %v467, -inf
    %542 = vmax.xlane.f32.xlu0 %v541
    %v543 = vpop.xlane.xlu0 %542
    %v544 = vsel %vm540, %v537, -inf
    %545 = vmax.xlane.f32.xlu0 %v544
    %v546 = vpop.xlane.xlu0 %545
    %v547 = vsub.f32 %v467, %v543
    %v548 = vsub.f32 %v537, %v546
    %v549 = vmul.f32 %v547, 1.442695
    %v550 = vpow.pop %v549
    %v551 = vmul.f32 %v548, 1.442695
    %v552 = vpow.pop %v551
    %v554 = vlaneseq
    %v555 = vshrl.u32 %v554, 7
    %v556 = vsub.s32 0, %v555
    %v557 = vrot.slane %v69, %v556
    %v559 = vmul.f32 %v550, %v557
    %v560 = vmul.f32 %v552, %v557
    %v562 = vsel %vm540, %v559, 0
    %v565 = vsel %vm540, %v560, 0
    %567 = vmatprep.subr.mxu0 0.0
    %568 = vmatpush1.msra.mxu0 %v61
    %569 = vmatprep.subr.mxu0 0.0
    %570 = vmatpush1.msra.mxu0 %v62
    %571 = vmatprep.subr.mxu0 0.0
    %572 = vmatpush1.msra.mxu0 %v63
    %573 = vmatprep.subr.mxu0 0.0
    %574 = vmatpush1.msra.mxu0 %v64
    %575 = vmatprep.subr.mxu0 0.0
    %576 = vmatpush1.msra.mxu0 %v65
    %577 = vmatprep.subr.mxu0 0.0
    %578 = vmatpush1.msra.mxu0 %v66
    %579 = vmatprep.subr.mxu0 0.0
    %580 = vmatpush1.msra.mxu0 %v67
    %581 = vmatprep.subr.mxu0 0.0
    %582 = vmatpush1.msra.mxu0 %v68
    %583 = vmatprep.subr.mxu0 0.0
    %584 = vmatpush1.msra.mxu0 0.0
    %585 = vmatprep.subr.mxu0 0.0
    %586 = vmatpush1.msra.mxu0 0.0
    %587 = vmatprep.subr.mxu0 0.0
    %588 = vmatpush1.msra.mxu0 0.0
    %589 = vmatprep.subr.mxu0 0.0
    %590 = vmatpush1.msra.mxu0 0.0
    %591 = vmatprep.subr.mxu0 0.0
    %592 = vmatpush1.msra.mxu0 0.0
    %593 = vmatprep.subr.mxu0 0.0
    %594 = vmatpush1.msra.mxu0 0.0
    %595 = vmatprep.subr.mxu0 0.0
    %596 = vmatpush1.msra.mxu0 0.0
    %597 = vmatprep.subr.mxu0 0.0
    %598 = vmatpush1.msra.mxu0 0.0
    %599 = vmatprep.subr.mxu0 0.0
    %600 = vmatpush1.msra.mxu0 0.0
    %601 = vmatprep.subr.mxu0 0.0
    %602 = vmatpush1.msra.mxu0 0.0
    %603 = vmatprep.subr.mxu0 0.0
    %604 = vmatpush1.msra.mxu0 0.0
    %605 = vmatprep.subr.mxu0 0.0
    %606 = vmatpush1.msra.mxu0 0.0
    %607 = vmatprep.subr.mxu0 0.0
    %608 = vmatpush1.msra.mxu0 0.0
    %609 = vmatprep.subr.mxu0 0.0
    %610 = vmatpush1.msra.mxu0 0.0
    %611 = vmatprep.subr.mxu0 0.0
    %612 = vmatpush1.msra.mxu0 0.0
    %613 = vmatprep.subr.mxu0 0.0
    %614 = vmatpush1.msra.mxu0 0.0
    %615 = vmatprep.subr.mxu0 0.0
    %616 = vmatpush1.msra.mxu0 0.0
    %617 = vmatprep.subr.mxu0 0.0
    %618 = vmatpush1.msra.mxu0 0.0
    %619 = vmatprep.subr.mxu0 0.0
    %620 = vmatpush1.msra.mxu0 0.0
    %621 = vmatprep.subr.mxu0 0.0
    %622 = vmatpush1.msra.mxu0 0.0
    %623 = vmatprep.subr.mxu0 0.0
    %624 = vmatpush1.msra.mxu0 0.0
    %625 = vmatprep.subr.mxu0 0.0
    %626 = vmatpush1.msra.mxu0 0.0
    %627 = vmatprep.subr.mxu0 0.0
    %628 = vmatpush1.msra.mxu0 0.0
    %629 = vmatprep.subr.mxu0 0.0
    %630 = vmatpush1.msra.mxu0 0.0
    %631 = vmatprep.mubr.f32.mxu0 0.0
    %632 = vmatmul.mubr.f32.gmra.mrb[0].mxu0 %v562
    %v633 = vpop.f32.mrb[0].mxu0
    %v634 = vadd.f32 0.0, %v633
    %v635 = vpop.f32.mrb[0].mxu0
    %636 = vmatprep.mubr.f32.mxu0 0.0
    %637 = vmatmul.mubr.f32.gmra.mrb[0].mxu0 %v565
    %v638 = vpop.f32.mrb[0].mxu0
    %v639 = vadd.f32 0.0, %v638
    %v640 = vpop.f32.mrb[0].mxu0
    %641 = vdwg.mxu0
    %v642 = vrcp.pop %v634
    %v643 = vrcp.pop %v639
    %v644 = vmul.f32 %v559, %v642
    %v645 = vmul.f32 %v560, %v643
    %v647 = vsel %vm540, %v644, 0
    %649 = vmatprep.subr.mxu0 0.0
    %650 = vmatpush1.msra.mxu0 %v384
    %651 = vmatprep.subr.mxu0 0.0
    %652 = vmatpush1.msra.mxu0 %v385
    %653 = vmatprep.subr.mxu0 0.0
    %654 = vmatpush1.msra.mxu0 %v386
    %655 = vmatprep.subr.mxu0 0.0
    %656 = vmatpush1.msra.mxu0 %v387
    %657 = vmatprep.subr.mxu0 0.0
    %658 = vmatpush1.msra.mxu0 %v388
    %659 = vmatprep.subr.mxu0 0.0
    %660 = vmatpush1.msra.mxu0 %v389
    %661 = vmatprep.subr.mxu0 0.0
    %662 = vmatpush1.msra.mxu0 %v390
    %663 = vmatprep.subr.mxu0 0.0
    %664 = vmatpush1.msra.mxu0 %v391
    %665 = vmatprep.subr.mxu0 0.0
    %666 = vmatpush1.msra.mxu0 0.0
    %667 = vmatprep.subr.mxu0 0.0
    %668 = vmatpush1.msra.mxu0 0.0
    %669 = vmatprep.subr.mxu0 0.0
    %670 = vmatpush1.msra.mxu0 0.0
    %671 = vmatprep.subr.mxu0 0.0
    %672 = vmatpush1.msra.mxu0 0.0
    %673 = vmatprep.subr.mxu0 0.0
    %674 = vmatpush1.msra.mxu0 0.0
    %675 = vmatprep.subr.mxu0 0.0
    %676 = vmatpush1.msra.mxu0 0.0
    %677 = vmatprep.subr.mxu0 0.0
    %678 = vmatpush1.msra.mxu0 0.0
    %679 = vmatprep.subr.mxu0 0.0
    %680 = vmatpush1.msra.mxu0 0.0
    %681 = vmatprep.subr.mxu0 0.0
    %682 = vmatpush1.msra.mxu0 0.0
    %683 = vmatprep.subr.mxu0 0.0
    %684 = vmatpush1.msra.mxu0 0.0
    %685 = vmatprep.subr.mxu0 0.0
    %686 = vmatpush1.msra.mxu0 0.0
    %687 = vmatprep.subr.mxu0 0.0
    %688 = vmatpush1.msra.mxu0 0.0
    %689 = vmatprep.subr.mxu0 0.0
    %690 = vmatpush1.msra.mxu0 0.0
    %691 = vmatprep.subr.mxu0 0.0
    %692 = vmatpush1.msra.mxu0 0.0
    %693 = vmatprep.subr.mxu0 0.0
    %694 = vmatpush1.msra.mxu0 0.0
    %695 = vmatprep.subr.mxu0 0.0
    %696 = vmatpush1.msra.mxu0 0.0
    %697 = vmatprep.subr.mxu0 0.0
    %698 = vmatpush1.msra.mxu0 0.0
    %699 = vmatprep.subr.mxu0 0.0
    %700 = vmatpush1.msra.mxu0 0.0
    %701 = vmatprep.subr.mxu0 0.0
    %702 = vmatpush1.msra.mxu0 0.0
    %703 = vmatprep.subr.mxu0 0.0
    %704 = vmatpush1.msra.mxu0 0.0
    %705 = vmatprep.subr.mxu0 0.0
    %706 = vmatpush1.msra.mxu0 0.0
    %707 = vmatprep.subr.mxu0 0.0
    %708 = vmatpush1.msra.mxu0 0.0
    %709 = vmatprep.subr.mxu0 0.0
    %710 = vmatpush1.msra.mxu0 0.0
    %711 = vmatprep.subr.mxu0 0.0
    %712 = vmatpush1.msra.mxu0 0.0
    %713 = vmatprep.mubr.f32.mxu0 0.0
    %714 = vmatmul.mubr.f32.gmra.mrb[0].mxu0 %v647
    %v715 = vpop.f32.mrb[0].mxu0
    %v716 = vadd.f32 0.0, %v715
    %v717 = vpop.f32.mrb[0].mxu0
    %718 = vdwg.mxu0
    %v720 = vsel %vm540, %v645, 0
    %722 = vmatprep.subr.mxu0 0.0
    %723 = vmatpush1.msra.mxu0 %v392
    %724 = vmatprep.subr.mxu0 0.0
    %725 = vmatpush1.msra.mxu0 %v393
    %726 = vmatprep.subr.mxu0 0.0
    %727 = vmatpush1.msra.mxu0 %v394
    %728 = vmatprep.subr.mxu0 0.0
    %729 = vmatpush1.msra.mxu0 %v395
    %730 = vmatprep.subr.mxu0 0.0
    %731 = vmatpush1.msra.mxu0 %v396
    %732 = vmatprep.subr.mxu0 0.0
    %733 = vmatpush1.msra.mxu0 %v397
    %734 = vmatprep.subr.mxu0 0.0
    %735 = vmatpush1.msra.mxu0 %v398
    %736 = vmatprep.subr.mxu0 0.0
    %737 = vmatpush1.msra.mxu0 %v399
    %738 = vmatprep.subr.mxu0 0.0
    %739 = vmatpush1.msra.mxu0 0.0
    %740 = vmatprep.subr.mxu0 0.0
    %741 = vmatpush1.msra.mxu0 0.0
    %742 = vmatprep.subr.mxu0 0.0
    %743 = vmatpush1.msra.mxu0 0.0
    %744 = vmatprep.subr.mxu0 0.0
    %745 = vmatpush1.msra.mxu0 0.0
    %746 = vmatprep.subr.mxu0 0.0
    %747 = vmatpush1.msra.mxu0 0.0
    %748 = vmatprep.subr.mxu0 0.0
    %749 = vmatpush1.msra.mxu0 0.0
    %750 = vmatprep.subr.mxu0 0.0
    %751 = vmatpush1.msra.mxu0 0.0
    %752 = vmatprep.subr.mxu0 0.0
    %753 = vmatpush1.msra.mxu0 0.0
    %754 = vmatprep.subr.mxu0 0.0
    %755 = vmatpush1.msra.mxu0 0.0
    %756 = vmatprep.subr.mxu0 0.0
    %757 = vmatpush1.msra.mxu0 0.0
    %758 = vmatprep.subr.mxu0 0.0
    %759 = vmatpush1.msra.mxu0 0.0
    %760 = vmatprep.subr.mxu0 0.0
    %761 = vmatpush1.msra.mxu0 0.0
    %762 = vmatprep.subr.mxu0 0.0
    %763 = vmatpush1.msra.mxu0 0.0
    %764 = vmatprep.subr.mxu0 0.0
    %765 = vmatpush1.msra.mxu0 0.0
    %766 = vmatprep.subr.mxu0 0.0
    %767 = vmatpush1.msra.mxu0 0.0
    %768 = vmatprep.subr.mxu0 0.0
    %769 = vmatpush1.msra.mxu0 0.0
    %770 = vmatprep.subr.mxu0 0.0
    %771 = vmatpush1.msra.mxu0 0.0
    %772 = vmatprep.subr.mxu0 0.0
    %773 = vmatpush1.msra.mxu0 0.0
    %774 = vmatprep.subr.mxu0 0.0
    %775 = vmatpush1.msra.mxu0 0.0
    %776 = vmatprep.subr.mxu0 0.0
    %777 = vmatpush1.msra.mxu0 0.0
    %778 = vmatprep.subr.mxu0 0.0
    %779 = vmatpush1.msra.mxu0 0.0
    %780 = vmatprep.subr.mxu0 0.0
    %781 = vmatpush1.msra.mxu0 0.0
    %782 = vmatprep.subr.mxu0 0.0
    %783 = vmatpush1.msra.mxu0 0.0
    %784 = vmatprep.subr.mxu0 0.0
    %785 = vmatpush1.msra.mxu0 0.0
    %786 = vmatprep.mubr.f32.mxu0 0.0
    %787 = vmatmul.mubr.f32.gmra.mrb[0].mxu0 %v720
    %v788 = vpop.f32.mrb[0].mxu0
    %v789 = vadd.f32 0.0, %v788
    %v790 = vpop.f32.mrb[0].mxu0
    %791 = vdwg.mxu0
    %v792 = vld [vmem:[%s7] sm:$0xff]
    %v793 = vld [vmem:[%s7 + $0x8] sm:$0xff]
    %v794 = vld [vmem:[%s7 + $0x10] sm:$0xff]
    %v795 = vld [vmem:[%s7 + $0x18] sm:$0xff]
    %v796 = vld [vmem:[%s7 + $0x20] sm:$0xff]
    %v797 = vld [vmem:[%s7 + $0x28] sm:$0xff]
    %v798 = vld [vmem:[%s7 + $0x30] sm:$0xff]
    %v799 = vld [vmem:[%s7 + $0x38] sm:$0xff]
    %v800 = vld [vmem:[%s7 + $0x40] sm:$0xff]
    %v801 = vld [vmem:[%s7 + $0x48] sm:$0xff]
    %v802 = vld [vmem:[%s7 + $0x50] sm:$0xff]
    %v803 = vld [vmem:[%s7 + $0x58] sm:$0xff]
    %v804 = vld [vmem:[%s7 + $0x60] sm:$0xff]
    %v805 = vld [vmem:[%s7 + $0x68] sm:$0xff]
    %v806 = vld [vmem:[%s7 + $0x70] sm:$0xff]
    %v807 = vld [vmem:[%s7 + $0x78] sm:$0xff]
    %v808 = vld [vmem:[%s8] sm:$0x1]
    %v810 = vlaneseq
    %v811 = vshrl.u32 %v810, 7
    %v812 = vsub.s32 0, %v811
    %v813 = vrot.slane %v808, %v812
    %815 = vmatprep.subr.mxu0 0.0
    %816 = vmatpush1.msra.mxu0 %v792
    %817 = vmatprep.subr.mxu0 0.0
    %818 = vmatpush1.msra.mxu0 %v793
    %819 = vmatprep.subr.mxu0 0.0
    %820 = vmatpush1.msra.mxu0 %v794
    %821 = vmatprep.subr.mxu0 0.0
    %822 = vmatpush1.msra.mxu0 %v795
    %823 = vmatprep.subr.mxu0 0.0
    %824 = vmatpush1.msra.mxu0 %v796
    %825 = vmatprep.subr.mxu0 0.0
    %826 = vmatpush1.msra.mxu0 %v797
    %827 = vmatprep.subr.mxu0 0.0
    %828 = vmatpush1.msra.mxu0 %v798
    %829 = vmatprep.subr.mxu0 0.0
    %830 = vmatpush1.msra.mxu0 %v799
    %831 = vmatprep.subr.mxu0 0.0
    %832 = vmatpush1.msra.mxu0 %v800
    %833 = vmatprep.subr.mxu0 0.0
    %834 = vmatpush1.msra.mxu0 %v801
    %835 = vmatprep.subr.mxu0 0.0
    %836 = vmatpush1.msra.mxu0 %v802
    %837 = vmatprep.subr.mxu0 0.0
    %838 = vmatpush1.msra.mxu0 %v803
    %839 = vmatprep.subr.mxu0 0.0
    %840 = vmatpush1.msra.mxu0 %v804
    %841 = vmatprep.subr.mxu0 0.0
    %842 = vmatpush1.msra.mxu0 %v805
    %843 = vmatprep.subr.mxu0 0.0
    %844 = vmatpush1.msra.mxu0 %v806
    %845 = vmatprep.subr.mxu0 0.0
    %846 = vmatpush1.msra.mxu0 %v807
    %847 = vmatprep.subr.mxu0 0.0
    %848 = vmatpush1.msra.mxu0 0.0
    %849 = vmatprep.subr.mxu0 0.0
    %850 = vmatpush1.msra.mxu0 0.0
    %851 = vmatprep.subr.mxu0 0.0
    %852 = vmatpush1.msra.mxu0 0.0
    %853 = vmatprep.subr.mxu0 0.0
    %854 = vmatpush1.msra.mxu0 0.0
    %855 = vmatprep.subr.mxu0 0.0
    %856 = vmatpush1.msra.mxu0 0.0
    %857 = vmatprep.subr.mxu0 0.0
    %858 = vmatpush1.msra.mxu0 0.0
    %859 = vmatprep.subr.mxu0 0.0
    %860 = vmatpush1.msra.mxu0 0.0
    %861 = vmatprep.subr.mxu0 0.0
    %862 = vmatpush1.msra.mxu0 0.0
    %863 = vmatprep.subr.mxu0 0.0
    %864 = vmatpush1.msra.mxu0 0.0
    %865 = vmatprep.subr.mxu0 0.0
    %866 = vmatpush1.msra.mxu0 0.0
    %867 = vmatprep.subr.mxu0 0.0
    %868 = vmatpush1.msra.mxu0 0.0
    %869 = vmatprep.subr.mxu0 0.0
    %870 = vmatpush1.msra.mxu0 0.0
    %871 = vmatprep.subr.mxu0 0.0
    %872 = vmatpush1.msra.mxu0 0.0
    %873 = vmatprep.subr.mxu0 0.0
    %874 = vmatpush1.msra.mxu0 0.0
    %875 = vmatprep.subr.mxu0 0.0
    %876 = vmatpush1.msra.mxu0 0.0
    %877 = vmatprep.subr.mxu0 0.0
    %878 = vmatpush1.msra.mxu0 0.0
    %879 = vmatprep.mubr.f32.mxu0 0.0
    %880 = vmatmul.mubr.f32.gmra.mrb[0].mxu0 %v716
    %v881 = vpop.f32.mrb[0].mxu0
    %v882 = vadd.f32 %v813, %v881
    %v883 = vpop.f32.mrb[0].mxu0
    %884 = vmatprep.mubr.f32.mxu0 0.0
    %885 = vmatmul.mubr.f32.gmra.mrb[0].mxu0 %v789
    %v886 = vpop.f32.mrb[0].mxu0
    %v887 = vadd.f32 %v813, %v886
    %v888 = vpop.f32.mrb[0].mxu0
    %889 = vdwg.mxu0
    %v890 = vmax.f32 %v882, 0.0
    %v891 = vmax.f32 %v887, 0.0
    %v892 = vadd.f32 %v890, %v70
    %v893 = vadd.f32 %v891, %v71
    %v894 = vld [vmem:[%s9] sm:$0x1]
    %v895 = vld [vmem:[%s10] sm:$0x1]
    %896 = vadd.xlane.f32.xlu0 %v892
    %v897 = vpop.xlane.xlu0 %896
    %898 = vadd.xlane.f32.xlu0 %v893
    %v899 = vpop.xlane.xlu0 %898
    %v900 = vmul.f32 %v897, 0.02
    %v901 = vmul.f32 %v899, 0.02
    %v902 = vsub.f32 %v892, %v900
    %v903 = vsub.f32 %v893, %v901
    %v904 = vmul.f32 %v902, %v52
    %v905 = vmul.f32 %v903, %v52
    %v906 = vmul.f32 %v904, %v904
    %v907 = vmul.f32 %v905, %v905
    %908 = vadd.xlane.f32.xlu0 %v906
    %v909 = vpop.xlane.xlu0 %908
    %910 = vadd.xlane.f32.xlu0 %v907
    %v911 = vpop.xlane.xlu0 %910
    %v912 = vmul.f32 %v909, 0.02
    %v913 = vmul.f32 %v911, 0.02
    %v914 = vadd.f32 %v912, 1e-05
    %v915 = vadd.f32 %v913, 1e-05
    %v916 = vrsqrt.pop %v914
    %v917 = vrsqrt.pop %v915
    %v918 = vmul.f32 %v904, %v916
    %v919 = vmul.f32 %v905, %v917
    %v921 = vlaneseq
    %v922 = vshrl.u32 %v921, 7
    %v923 = vsub.s32 0, %v922
    %v924 = vrot.slane %v894, %v923
    %v926 = vmul.f32 %v918, %v924
    %v927 = vmul.f32 %v919, %v924
    %v929 = vlaneseq
    %v930 = vshrl.u32 %v929, 7
    %v931 = vsub.s32 0, %v930
    %v932 = vrot.slane %v895, %v931
    %v934 = vadd.f32 %v926, %v932
    %v935 = vadd.f32 %v927, %v932
    %v936 = vld [vmem:[%s11] sm:$0xff]
    %v937 = vld [vmem:[%s11 + $0x8] sm:$0xff]
    %v938 = vld [vmem:[%s11 + $0x10] sm:$0xff]
    %v939 = vld [vmem:[%s11 + $0x18] sm:$0xff]
    %v940 = vld [vmem:[%s11 + $0x20] sm:$0xff]
    %v941 = vld [vmem:[%s11 + $0x28] sm:$0xff]
    %v942 = vld [vmem:[%s11 + $0x30] sm:$0xff]
    %v943 = vld [vmem:[%s11 + $0x38] sm:$0xff]
    %v944 = vld [vmem:[%s11 + $0x40] sm:$0xff]
    %v945 = vld [vmem:[%s11 + $0x48] sm:$0xff]
    %v946 = vld [vmem:[%s11 + $0x50] sm:$0xff]
    %v947 = vld [vmem:[%s11 + $0x58] sm:$0xff]
    %v948 = vld [vmem:[%s11 + $0x60] sm:$0xff]
    %v949 = vld [vmem:[%s11 + $0x68] sm:$0xff]
    %v950 = vld [vmem:[%s11 + $0x70] sm:$0xff]
    %v951 = vld [vmem:[%s11 + $0x78] sm:$0xff]
    %v952 = vld [vmem:[%s11 + $0x80] sm:$0xff]
    %v953 = vld [vmem:[%s11 + $0x88] sm:$0xff]
    %v954 = vld [vmem:[%s11 + $0x90] sm:$0xff]
    %v955 = vld [vmem:[%s11 + $0x98] sm:$0xff]
    %v956 = vld [vmem:[%s11 + $0xa0] sm:$0xff]
    %v957 = vld [vmem:[%s11 + $0xa8] sm:$0xff]
    %v958 = vld [vmem:[%s11 + $0xb0] sm:$0xff]
    %v959 = vld [vmem:[%s11 + $0xb8] sm:$0xff]
    %v960 = vld [vmem:[%s11 + $0xc0] sm:$0xff]
    %v961 = vld [vmem:[%s11 + $0xc8] sm:$0xff]
    %v962 = vld [vmem:[%s11 + $0xd0] sm:$0xff]
    %v963 = vld [vmem:[%s11 + $0xd8] sm:$0xff]
    %v964 = vld [vmem:[%s11 + $0xe0] sm:$0xff]
    %v965 = vld [vmem:[%s11 + $0xe8] sm:$0xff]
    %v966 = vld [vmem:[%s11 + $0xf0] sm:$0xff]
    %v967 = vld [vmem:[%s11 + $0xf8] sm:$0xff]
    %v968 = vld [vmem:[%s11 + $0x100] sm:$0xff]
    %v969 = vld [vmem:[%s11 + $0x108] sm:$0xff]
    %v970 = vld [vmem:[%s11 + $0x110] sm:$0xff]
    %v971 = vld [vmem:[%s11 + $0x118] sm:$0xff]
    %v972 = vld [vmem:[%s11 + $0x120] sm:$0xff]
    %v973 = vld [vmem:[%s11 + $0x128] sm:$0xff]
    %v974 = vld [vmem:[%s11 + $0x130] sm:$0xff]
    %v975 = vld [vmem:[%s11 + $0x138] sm:$0xff]
    %v976 = vld [vmem:[%s11 + $0x140] sm:$0xff]
    %v977 = vld [vmem:[%s11 + $0x148] sm:$0xff]
    %v978 = vld [vmem:[%s11 + $0x150] sm:$0xff]
    %v979 = vld [vmem:[%s11 + $0x158] sm:$0xff]
    %v980 = vld [vmem:[%s11 + $0x160] sm:$0xff]
    %v981 = vld [vmem:[%s11 + $0x168] sm:$0xff]
    %v982 = vld [vmem:[%s11 + $0x170] sm:$0xff]
    %v983 = vld [vmem:[%s11 + $0x178] sm:$0xff]
    %984 = vmatprep.subr.mxu0 %v937
    %985 = vmatpush1.msra.mxu0 %v936
    %986 = vmatprep.subr.mxu0 %v940
    %987 = vmatpush1.msra.mxu0 %v939
    %988 = vmatprep.subr.mxu0 %v943
    %989 = vmatpush1.msra.mxu0 %v942
    %990 = vmatprep.subr.mxu0 %v946
    %991 = vmatpush1.msra.mxu0 %v945
    %992 = vmatprep.subr.mxu0 %v949
    %993 = vmatpush1.msra.mxu0 %v948
    %994 = vmatprep.subr.mxu0 %v952
    %995 = vmatpush1.msra.mxu0 %v951
    %996 = vmatprep.subr.mxu0 %v955
    %997 = vmatpush1.msra.mxu0 %v954
    %998 = vmatprep.subr.mxu0 %v958
    %999 = vmatpush1.msra.mxu0 %v957
    %1000 = vmatprep.subr.mxu0 %v961
    %1001 = vmatpush1.msra.mxu0 %v960
    %1002 = vmatprep.subr.mxu0 %v964
    %1003 = vmatpush1.msra.mxu0 %v963
    %1004 = vmatprep.subr.mxu0 %v967
    %1005 = vmatpush1.msra.mxu0 %v966
    %1006 = vmatprep.subr.mxu0 %v970
    %1007 = vmatpush1.msra.mxu0 %v969
    %1008 = vmatprep.subr.mxu0 %v973
    %1009 = vmatpush1.msra.mxu0 %v972
    %1010 = vmatprep.subr.mxu0 %v976
    %1011 = vmatpush1.msra.mxu0 %v975
    %1012 = vmatprep.subr.mxu0 %v979
    %1013 = vmatpush1.msra.mxu0 %v978
    %1014 = vmatprep.subr.mxu0 %v982
    %1015 = vmatpush1.msra.mxu0 %v981
    %1016 = vmatprep.subr.mxu0 0.0
    %1017 = vmatpush1.msra.mxu0 0.0
    %1018 = vmatprep.subr.mxu0 0.0
    %1019 = vmatpush1.msra.mxu0 0.0
    %1020 = vmatprep.subr.mxu0 0.0
    %1021 = vmatpush1.msra.mxu0 0.0
    %1022 = vmatprep.subr.mxu0 0.0
    %1023 = vmatpush1.msra.mxu0 0.0
    %1024 = vmatprep.subr.mxu0 0.0
    %1025 = vmatpush1.msra.mxu0 0.0
    %1026 = vmatprep.subr.mxu0 0.0
    %1027 = vmatpush1.msra.mxu0 0.0
    %1028 = vmatprep.subr.mxu0 0.0
    %1029 = vmatpush1.msra.mxu0 0.0
    %1030 = vmatprep.subr.mxu0 0.0
    %1031 = vmatpush1.msra.mxu0 0.0
    %1032 = vmatprep.subr.mxu0 0.0
    %1033 = vmatpush1.msra.mxu0 0.0
    %1034 = vmatprep.subr.mxu0 0.0
    %1035 = vmatpush1.msra.mxu0 0.0
    %1036 = vmatprep.subr.mxu0 0.0
    %1037 = vmatpush1.msra.mxu0 0.0
    %1038 = vmatprep.subr.mxu0 0.0
    %1039 = vmatpush1.msra.mxu0 0.0
    %1040 = vmatprep.subr.mxu0 0.0
    %1041 = vmatpush1.msra.mxu0 0.0
    %1042 = vmatprep.subr.mxu0 0.0
    %1043 = vmatpush1.msra.mxu0 0.0
    %1044 = vmatprep.subr.mxu0 0.0
    %1045 = vmatpush1.msra.mxu0 0.0
    %1046 = vmatprep.subr.mxu0 0.0
    %1047 = vmatpush1.msra.mxu0 0.0
    %1048 = vmatprep.mubr.f32.mxu0 0.0
    %1049 = vmatmul.mubr.f32.gmra.mrb[0].mxu0 %v934
    %v1050 = vpop.f32.mrb[0].mxu0
    %v1051 = vadd.f32 0.0, %v1050
    %v1052 = vpop.f32.mrb[0].mxu0
    %v1053 = vadd.f32 0.0, %v1052
    %1054 = vmatprep.mubr.f32.mxu0 0.0
    %1055 = vmatmul.mubr.f32.gmra.mrb[0].mxu0 %v935
    %v1056 = vpop.f32.mrb[0].mxu0
    %v1057 = vadd.f32 0.0, %v1056
    %v1058 = vpop.f32.mrb[0].mxu0
    %v1059 = vadd.f32 0.0, %v1058
    %1060 = vdwg.mxu0
    %1061 = vmatprep.subr.mxu0 0.0
    %1062 = vmatpush1.msra.mxu0 %v938
    %1063 = vmatprep.subr.mxu0 0.0
    %1064 = vmatpush1.msra.mxu0 %v941
    %1065 = vmatprep.subr.mxu0 0.0
    %1066 = vmatpush1.msra.mxu0 %v944
    %1067 = vmatprep.subr.mxu0 0.0
    %1068 = vmatpush1.msra.mxu0 %v947
    %1069 = vmatprep.subr.mxu0 0.0
    %1070 = vmatpush1.msra.mxu0 %v950
    %1071 = vmatprep.subr.mxu0 0.0
    %1072 = vmatpush1.msra.mxu0 %v953
    %1073 = vmatprep.subr.mxu0 0.0
    %1074 = vmatpush1.msra.mxu0 %v956
    %1075 = vmatprep.subr.mxu0 0.0
    %1076 = vmatpush1.msra.mxu0 %v959
    %1077 = vmatprep.subr.mxu0 0.0
    %1078 = vmatpush1.msra.mxu0 %v962
    %1079 = vmatprep.subr.mxu0 0.0
    %1080 = vmatpush1.msra.mxu0 %v965
    %1081 = vmatprep.subr.mxu0 0.0
    %1082 = vmatpush1.msra.mxu0 %v968
    %1083 = vmatprep.subr.mxu0 0.0
    %1084 = vmatpush1.msra.mxu0 %v971
    %1085 = vmatprep.subr.mxu0 0.0
    %1086 = vmatpush1.msra.mxu0 %v974
    %1087 = vmatprep.subr.mxu0 0.0
    %1088 = vmatpush1.msra.mxu0 %v977
    %1089 = vmatprep.subr.mxu0 0.0
    %1090 = vmatpush1.msra.mxu0 %v980
    %1091 = vmatprep.subr.mxu0 0.0
    %1092 = vmatpush1.msra.mxu0 %v983
    %1093 = vmatprep.subr.mxu0 0.0
    %1094 = vmatpush1.msra.mxu0 0.0
    %1095 = vmatprep.subr.mxu0 0.0
    %1096 = vmatpush1.msra.mxu0 0.0
    %1097 = vmatprep.subr.mxu0 0.0
    %1098 = vmatpush1.msra.mxu0 0.0
    %1099 = vmatprep.subr.mxu0 0.0
    %1100 = vmatpush1.msra.mxu0 0.0
    %1101 = vmatprep.subr.mxu0 0.0
    %1102 = vmatpush1.msra.mxu0 0.0
    %1103 = vmatprep.subr.mxu0 0.0
    %1104 = vmatpush1.msra.mxu0 0.0
    %1105 = vmatprep.subr.mxu0 0.0
    %1106 = vmatpush1.msra.mxu0 0.0
    %1107 = vmatprep.subr.mxu0 0.0
    %1108 = vmatpush1.msra.mxu0 0.0
    %1109 = vmatprep.subr.mxu0 0.0
    %1110 = vmatpush1.msra.mxu0 0.0
    %1111 = vmatprep.subr.mxu0 0.0
    %1112 = vmatpush1.msra.mxu0 0.0
    %1113 = vmatprep.subr.mxu0 0.0
    %1114 = vmatpush1.msra.mxu0 0.0
    %1115 = vmatprep.subr.mxu0 0.0
    %1116 = vmatpush1.msra.mxu0 0.0
    %1117 = vmatprep.subr.mxu0 0.0
    %1118 = vmatpush1.msra.mxu0 0.0
    %1119 = vmatprep.subr.mxu0 0.0
    %1120 = vmatpush1.msra.mxu0 0.0
    %1121 = vmatprep.subr.mxu0 0.0
    %1122 = vmatpush1.msra.mxu0 0.0
    %1123 = vmatprep.subr.mxu0 0.0
    %1124 = vmatpush1.msra.mxu0 0.0
    %1125 = vmatprep.mubr.f32.mxu0 0.0
    %1126 = vmatmul.mubr.f32.gmra.mrb[0].mxu0 %v934
    %v1127 = vpop.f32.mrb[0].mxu0
    %v1128 = vadd.f32 0.0, %v1127
    %v1129 = vpop.f32.mrb[0].mxu0
    %1130 = vmatprep.mubr.f32.mxu0 0.0
    %1131 = vmatmul.mubr.f32.gmra.mrb[0].mxu0 %v935
    %v1132 = vpop.f32.mrb[0].mxu0
    %v1133 = vadd.f32 0.0, %v1132
    %v1134 = vpop.f32.mrb[0].mxu0
    %1135 = vdwg.mxu0
    %v1136 = vmax.f32 %v1051, 0.0
    %v1137 = vmax.f32 %v1053, 0.0
    %v1138 = vmax.f32 %v1128, 0.0
    %v1139 = vmax.f32 %v1057, 0.0
    %v1140 = vmax.f32 %v1059, 0.0
    %v1141 = vmax.f32 %v1133, 0.0
    %v1142 = vmul.f32 %v1137, %v331
    %v1143 = vmul.f32 %v1137, %v335
    %v1144 = vmul.f32 %v1137, %v339
    %v1145 = vmul.f32 %v1137, %v343
    %v1146 = vmul.f32 %v1137, %v347
    %v1147 = vmul.f32 %v1137, %v351
    %v1148 = vmul.f32 %v1137, %v355
    %v1149 = vmul.f32 %v1137, %v359
    %v1150 = vmul.f32 %v1140, %v331
    %v1151 = vmul.f32 %v1140, %v335
    %v1152 = vmul.f32 %v1140, %v339
    %v1153 = vmul.f32 %v1140, %v343
    %v1154 = vmul.f32 %v1140, %v347
    %v1155 = vmul.f32 %v1140, %v351
    %v1156 = vmul.f32 %v1140, %v355
    %v1157 = vmul.f32 %v1140, %v359
    %v1158 = vmul.f32 %v1138, %v331
    %v1159 = vmul.f32 %v1138, %v335
    %v1160 = vmul.f32 %v1138, %v339
    %v1161 = vmul.f32 %v1138, %v343
    %v1162 = vmul.f32 %v1138, %v347
    %v1163 = vmul.f32 %v1138, %v351
    %v1164 = vmul.f32 %v1138, %v355
    %v1165 = vmul.f32 %v1138, %v359
    %v1166 = vmul.f32 %v1141, %v331
    %v1167 = vmul.f32 %v1141, %v335
    %v1168 = vmul.f32 %v1141, %v339
    %v1169 = vmul.f32 %v1141, %v343
    %v1170 = vmul.f32 %v1141, %v347
    %v1171 = vmul.f32 %v1141, %v351
    %v1172 = vmul.f32 %v1141, %v355
    %v1173 = vmul.f32 %v1141, %v359
    %1174 = vmatprep.subr.mxu0 0.0
    %1175 = vmatpush1.xpose.msra.mxu0 %v1142
    %1176 = vmatprep.subr.mxu0 0.0
    %1177 = vmatpush1.xpose.msra.mxu0 %v1143
    %1178 = vmatprep.subr.mxu0 0.0
    %1179 = vmatpush1.xpose.msra.mxu0 %v1144
    %1180 = vmatprep.subr.mxu0 0.0
    %1181 = vmatpush1.xpose.msra.mxu0 %v1145
    %1182 = vmatprep.subr.mxu0 0.0
    %1183 = vmatpush1.xpose.msra.mxu0 %v1146
    %1184 = vmatprep.subr.mxu0 0.0
    %1185 = vmatpush1.xpose.msra.mxu0 %v1147
    %1186 = vmatprep.subr.mxu0 0.0
    %1187 = vmatpush1.xpose.msra.mxu0 %v1148
    %1188 = vmatprep.subr.mxu0 0.0
    %1189 = vmatpush1.xpose.msra.mxu0 %v1149
    %1190 = vmatprep.subr.mxu0 0.0
    %1191 = vmatpush1.xpose.msra.mxu0 0.0
    %1192 = vmatprep.subr.mxu0 0.0
    %1193 = vmatpush1.xpose.msra.mxu0 0.0
    %1194 = vmatprep.subr.mxu0 0.0
    %1195 = vmatpush1.xpose.msra.mxu0 0.0
    %1196 = vmatprep.subr.mxu0 0.0
    %1197 = vmatpush1.xpose.msra.mxu0 0.0
    %1198 = vmatprep.subr.mxu0 0.0
    %1199 = vmatpush1.xpose.msra.mxu0 0.0
    %1200 = vmatprep.subr.mxu0 0.0
    %1201 = vmatpush1.xpose.msra.mxu0 0.0
    %1202 = vmatprep.subr.mxu0 0.0
    %1203 = vmatpush1.xpose.msra.mxu0 0.0
    %1204 = vmatprep.subr.mxu0 0.0
    %1205 = vmatpush1.xpose.msra.mxu0 0.0
    %1206 = vmatprep.subr.mxu0 0.0
    %1207 = vmatpush1.xpose.msra.mxu0 0.0
    %1208 = vmatprep.subr.mxu0 0.0
    %1209 = vmatpush1.xpose.msra.mxu0 0.0
    %1210 = vmatprep.subr.mxu0 0.0
    %1211 = vmatpush1.xpose.msra.mxu0 0.0
    %1212 = vmatprep.subr.mxu0 0.0
    %1213 = vmatpush1.xpose.msra.mxu0 0.0
    %1214 = vmatprep.subr.mxu0 0.0
    %1215 = vmatpush1.xpose.msra.mxu0 0.0
    %1216 = vmatprep.subr.mxu0 0.0
    %1217 = vmatpush1.xpose.msra.mxu0 0.0
    %1218 = vmatprep.subr.mxu0 0.0
    %1219 = vmatpush1.xpose.msra.mxu0 0.0
    %1220 = vmatprep.subr.mxu0 0.0
    %1221 = vmatpush1.xpose.msra.mxu0 0.0
    %1222 = vmatprep.subr.mxu0 0.0
    %1223 = vmatpush1.xpose.msra.mxu0 0.0
    %1224 = vmatprep.subr.mxu0 0.0
    %1225 = vmatpush1.xpose.msra.mxu0 0.0
    %1226 = vmatprep.subr.mxu0 0.0
    %1227 = vmatpush1.xpose.msra.mxu0 0.0
    %1228 = vmatprep.subr.mxu0 0.0
    %1229 = vmatpush1.xpose.msra.mxu0 0.0
    %1230 = vmatprep.subr.mxu0 0.0
    %1231 = vmatpush1.xpose.msra.mxu0 0.0
    %1232 = vmatprep.subr.mxu0 0.0
    %1233 = vmatpush1.xpose.msra.mxu0 0.0
    %1234 = vmatprep.subr.mxu0 0.0
    %1235 = vmatpush1.xpose.msra.mxu0 0.0
    %1236 = vmatprep.subr.mxu0 0.0
    %1237 = vmatpush1.xpose.msra.mxu0 0.0
    %1238 = vmatprep.mubr.f32.mxu0 0.0
    %1239 = vmatmul.mubr.f32.gmra.mrb[0].mxu0 %v1136
    %v1240 = vpop.f32.mrb[0].mxu0
    %v1241 = vadd.f32 0.0, %v1240
    %v1242 = vpop.f32.mrb[0].mxu0
    %1243 = vdwg.mxu0
    %1244 = vmatprep.subr.mxu0 0.0
    %1245 = vmatpush1.xpose.msra.mxu0 %v1150
    %1246 = vmatprep.subr.mxu0 0.0
    %1247 = vmatpush1.xpose.msra.mxu0 %v1151
    %1248 = vmatprep.subr.mxu0 0.0
    %1249 = vmatpush1.xpose.msra.mxu0 %v1152
    %1250 = vmatprep.subr.mxu0 0.0
    %1251 = vmatpush1.xpose.msra.mxu0 %v1153
    %1252 = vmatprep.subr.mxu0 0.0
    %1253 = vmatpush1.xpose.msra.mxu0 %v1154
    %1254 = vmatprep.subr.mxu0 0.0
    %1255 = vmatpush1.xpose.msra.mxu0 %v1155
    %1256 = vmatprep.subr.mxu0 0.0
    %1257 = vmatpush1.xpose.msra.mxu0 %v1156
    %1258 = vmatprep.subr.mxu0 0.0
    %1259 = vmatpush1.xpose.msra.mxu0 %v1157
    %1260 = vmatprep.subr.mxu0 0.0
    %1261 = vmatpush1.xpose.msra.mxu0 0.0
    %1262 = vmatprep.subr.mxu0 0.0
    %1263 = vmatpush1.xpose.msra.mxu0 0.0
    %1264 = vmatprep.subr.mxu0 0.0
    %1265 = vmatpush1.xpose.msra.mxu0 0.0
    %1266 = vmatprep.subr.mxu0 0.0
    %1267 = vmatpush1.xpose.msra.mxu0 0.0
    %1268 = vmatprep.subr.mxu0 0.0
    %1269 = vmatpush1.xpose.msra.mxu0 0.0
    %1270 = vmatprep.subr.mxu0 0.0
    %1271 = vmatpush1.xpose.msra.mxu0 0.0
    %1272 = vmatprep.subr.mxu0 0.0
    %1273 = vmatpush1.xpose.msra.mxu0 0.0
    %1274 = vmatprep.subr.mxu0 0.0
    %1275 = vmatpush1.xpose.msra.mxu0 0.0
    %1276 = vmatprep.subr.mxu0 0.0
    %1277 = vmatpush1.xpose.msra.mxu0 0.0
    %1278 = vmatprep.subr.mxu0 0.0
    %1279 = vmatpush1.xpose.msra.mxu0 0.0
    %1280 = vmatprep.subr.mxu0 0.0
    %1281 = vmatpush1.xpose.msra.mxu0 0.0
    %1282 = vmatprep.subr.mxu0 0.0
    %1283 = vmatpush1.xpose.msra.mxu0 0.0
    %1284 = vmatprep.subr.mxu0 0.0
    %1285 = vmatpush1.xpose.msra.mxu0 0.0
    %1286 = vmatprep.subr.mxu0 0.0
    %1287 = vmatpush1.xpose.msra.mxu0 0.0
    %1288 = vmatprep.subr.mxu0 0.0
    %1289 = vmatpush1.xpose.msra.mxu0 0.0
    %1290 = vmatprep.subr.mxu0 0.0
    %1291 = vmatpush1.xpose.msra.mxu0 0.0
    %1292 = vmatprep.subr.mxu0 0.0
    %1293 = vmatpush1.xpose.msra.mxu0 0.0
    %1294 = vmatprep.subr.mxu0 0.0
    %1295 = vmatpush1.xpose.msra.mxu0 0.0
    %1296 = vmatprep.subr.mxu0 0.0
    %1297 = vmatpush1.xpose.msra.mxu0 0.0
    %1298 = vmatprep.subr.mxu0 0.0
    %1299 = vmatpush1.xpose.msra.mxu0 0.0
    %1300 = vmatprep.subr.mxu0 0.0
    %1301 = vmatpush1.xpose.msra.mxu0 0.0
    %1302 = vmatprep.subr.mxu0 0.0
    %1303 = vmatpush1.xpose.msra.mxu0 0.0
    %1304 = vmatprep.subr.mxu0 0.0
    %1305 = vmatpush1.xpose.msra.mxu0 0.0
    %1306 = vmatprep.subr.mxu0 0.0
    %1307 = vmatpush1.xpose.msra.mxu0 0.0
    %1308 = vmatprep.mubr.f32.mxu0 0.0
    %1309 = vmatmul.mubr.f32.gmra.mrb[0].mxu0 %v1139
    %v1310 = vpop.f32.mrb[0].mxu0
    %v1311 = vadd.f32 0.0, %v1310
    %v1312 = vpop.f32.mrb[0].mxu0
    %1313 = vdwg.mxu0
    %v1314 = vsel %vm540, %v1241, -inf
    %1315 = vmax.xlane.f32.xlu0 %v1314
    %v1316 = vpop.xlane.xlu0 %1315
    %v1317 = vsel %vm540, %v1311, -inf
    %1318 = vmax.xlane.f32.xlu0 %v1317
    %v1319 = vpop.xlane.xlu0 %1318
    %v1320 = vsub.f32 %v1241, %v1316
    %v1321 = vsub.f32 %v1311, %v1319
    %v1322 = vmul.f32 %v1320, 1.442695
    %v1323 = vpow.pop %v1322
    %v1324 = vmul.f32 %v1321, 1.442695
    %v1325 = vpow.pop %v1324
    %v1326 = vmul.f32 %v1323, %v557
    %v1327 = vmul.f32 %v1325, %v557
    %v1329 = vsel %vm540, %v1326, 0
    %v1332 = vsel %vm540, %v1327, 0
    %1334 = vmatprep.subr.mxu0 0.0
    %1335 = vmatpush1.msra.mxu0 %v61
    %1336 = vmatprep.subr.mxu0 0.0
    %1337 = vmatpush1.msra.mxu0 %v62
    %1338 = vmatprep.subr.mxu0 0.0
    %1339 = vmatpush1.msra.mxu0 %v63
    %1340 = vmatprep.subr.mxu0 0.0
    %1341 = vmatpush1.msra.mxu0 %v64
    %1342 = vmatprep.subr.mxu0 0.0
    %1343 = vmatpush1.msra.mxu0 %v65
    %1344 = vmatprep.subr.mxu0 0.0
    %1345 = vmatpush1.msra.mxu0 %v66
    %1346 = vmatprep.subr.mxu0 0.0
    %1347 = vmatpush1.msra.mxu0 %v67
    %1348 = vmatprep.subr.mxu0 0.0
    %1349 = vmatpush1.msra.mxu0 %v68
    %1350 = vmatprep.subr.mxu0 0.0
    %1351 = vmatpush1.msra.mxu0 0.0
    %1352 = vmatprep.subr.mxu0 0.0
    %1353 = vmatpush1.msra.mxu0 0.0
    %1354 = vmatprep.subr.mxu0 0.0
    %1355 = vmatpush1.msra.mxu0 0.0
    %1356 = vmatprep.subr.mxu0 0.0
    %1357 = vmatpush1.msra.mxu0 0.0
    %1358 = vmatprep.subr.mxu0 0.0
    %1359 = vmatpush1.msra.mxu0 0.0
    %1360 = vmatprep.subr.mxu0 0.0
    %1361 = vmatpush1.msra.mxu0 0.0
    %1362 = vmatprep.subr.mxu0 0.0
    %1363 = vmatpush1.msra.mxu0 0.0
    %1364 = vmatprep.subr.mxu0 0.0
    %1365 = vmatpush1.msra.mxu0 0.0
    %1366 = vmatprep.subr.mxu0 0.0
    %1367 = vmatpush1.msra.mxu0 0.0
    %1368 = vmatprep.subr.mxu0 0.0
    %1369 = vmatpush1.msra.mxu0 0.0
    %1370 = vmatprep.subr.mxu0 0.0
    %1371 = vmatpush1.msra.mxu0 0.0
    %1372 = vmatprep.subr.mxu0 0.0
    %1373 = vmatpush1.msra.mxu0 0.0
    %1374 = vmatprep.subr.mxu0 0.0
    %1375 = vmatpush1.msra.mxu0 0.0
    %1376 = vmatprep.subr.mxu0 0.0
    %1377 = vmatpush1.msra.mxu0 0.0
    %1378 = vmatprep.subr.mxu0 0.0
    %1379 = vmatpush1.msra.mxu0 0.0
    %1380 = vmatprep.subr.mxu0 0.0
    %1381 = vmatpush1.msra.mxu0 0.0
    %1382 = vmatprep.subr.mxu0 0.0
    %1383 = vmatpush1.msra.mxu0 0.0
    %1384 = vmatprep.subr.mxu0 0.0
    %1385 = vmatpush1.msra.mxu0 0.0
    %1386 = vmatprep.subr.mxu0 0.0
    %1387 = vmatpush1.msra.mxu0 0.0
    %1388 = vmatprep.subr.mxu0 0.0
    %1389 = vmatpush1.msra.mxu0 0.0
    %1390 = vmatprep.subr.mxu0 0.0
    %1391 = vmatpush1.msra.mxu0 0.0
    %1392 = vmatprep.subr.mxu0 0.0
    %1393 = vmatpush1.msra.mxu0 0.0
    %1394 = vmatprep.subr.mxu0 0.0
    %1395 = vmatpush1.msra.mxu0 0.0
    %1396 = vmatprep.subr.mxu0 0.0
    %1397 = vmatpush1.msra.mxu0 0.0
    %1398 = vmatprep.mubr.f32.mxu0 0.0
    %1399 = vmatmul.mubr.f32.gmra.mrb[0].mxu0 %v1329
    %v1400 = vpop.f32.mrb[0].mxu0
    %v1401 = vadd.f32 0.0, %v1400
    %v1402 = vpop.f32.mrb[0].mxu0
    %1403 = vmatprep.mubr.f32.mxu0 0.0
    %1404 = vmatmul.mubr.f32.gmra.mrb[0].mxu0 %v1332
    %v1405 = vpop.f32.mrb[0].mxu0
    %v1406 = vadd.f32 0.0, %v1405
    %v1407 = vpop.f32.mrb[0].mxu0
    %1408 = vdwg.mxu0
    %v1409 = vrcp.pop %v1401
    %v1410 = vrcp.pop %v1406
    %v1411 = vmul.f32 %v1326, %v1409
    %v1412 = vmul.f32 %v1327, %v1410
    %v1414 = vsel %vm540, %v1411, 0
    %1416 = vmatprep.subr.mxu0 0.0
    %1417 = vmatpush1.msra.mxu0 %v1158
    %1418 = vmatprep.subr.mxu0 0.0
    %1419 = vmatpush1.msra.mxu0 %v1159
    %1420 = vmatprep.subr.mxu0 0.0
    %1421 = vmatpush1.msra.mxu0 %v1160
    %1422 = vmatprep.subr.mxu0 0.0
    %1423 = vmatpush1.msra.mxu0 %v1161
    %1424 = vmatprep.subr.mxu0 0.0
    %1425 = vmatpush1.msra.mxu0 %v1162
    %1426 = vmatprep.subr.mxu0 0.0
    %1427 = vmatpush1.msra.mxu0 %v1163
    %1428 = vmatprep.subr.mxu0 0.0
    %1429 = vmatpush1.msra.mxu0 %v1164
    %1430 = vmatprep.subr.mxu0 0.0
    %1431 = vmatpush1.msra.mxu0 %v1165
    %1432 = vmatprep.subr.mxu0 0.0
    %1433 = vmatpush1.msra.mxu0 0.0
    %1434 = vmatprep.subr.mxu0 0.0
    %1435 = vmatpush1.msra.mxu0 0.0
    %1436 = vmatprep.subr.mxu0 0.0
    %1437 = vmatpush1.msra.mxu0 0.0
    %1438 = vmatprep.subr.mxu0 0.0
    %1439 = vmatpush1.msra.mxu0 0.0
    %1440 = vmatprep.subr.mxu0 0.0
    %1441 = vmatpush1.msra.mxu0 0.0
    %1442 = vmatprep.subr.mxu0 0.0
    %1443 = vmatpush1.msra.mxu0 0.0
    %1444 = vmatprep.subr.mxu0 0.0
    %1445 = vmatpush1.msra.mxu0 0.0
    %1446 = vmatprep.subr.mxu0 0.0
    %1447 = vmatpush1.msra.mxu0 0.0
    %1448 = vmatprep.subr.mxu0 0.0
    %1449 = vmatpush1.msra.mxu0 0.0
    %1450 = vmatprep.subr.mxu0 0.0
    %1451 = vmatpush1.msra.mxu0 0.0
    %1452 = vmatprep.subr.mxu0 0.0
    %1453 = vmatpush1.msra.mxu0 0.0
    %1454 = vmatprep.subr.mxu0 0.0
    %1455 = vmatpush1.msra.mxu0 0.0
    %1456 = vmatprep.subr.mxu0 0.0
    %1457 = vmatpush1.msra.mxu0 0.0
    %1458 = vmatprep.subr.mxu0 0.0
    %1459 = vmatpush1.msra.mxu0 0.0
    %1460 = vmatprep.subr.mxu0 0.0
    %1461 = vmatpush1.msra.mxu0 0.0
    %1462 = vmatprep.subr.mxu0 0.0
    %1463 = vmatpush1.msra.mxu0 0.0
    %1464 = vmatprep.subr.mxu0 0.0
    %1465 = vmatpush1.msra.mxu0 0.0
    %1466 = vmatprep.subr.mxu0 0.0
    %1467 = vmatpush1.msra.mxu0 0.0
    %1468 = vmatprep.subr.mxu0 0.0
    %1469 = vmatpush1.msra.mxu0 0.0
    %1470 = vmatprep.subr.mxu0 0.0
    %1471 = vmatpush1.msra.mxu0 0.0
    %1472 = vmatprep.subr.mxu0 0.0
    %1473 = vmatpush1.msra.mxu0 0.0
    %1474 = vmatprep.subr.mxu0 0.0
    %1475 = vmatpush1.msra.mxu0 0.0
    %1476 = vmatprep.subr.mxu0 0.0
    %1477 = vmatpush1.msra.mxu0 0.0
    %1478 = vmatprep.subr.mxu0 0.0
    %1479 = vmatpush1.msra.mxu0 0.0
    %1480 = vmatprep.mubr.f32.mxu0 0.0
    %1481 = vmatmul.mubr.f32.gmra.mrb[0].mxu0 %v1414
    %v1482 = vpop.f32.mrb[0].mxu0
    %v1483 = vadd.f32 0.0, %v1482
    %v1484 = vpop.f32.mrb[0].mxu0
    %1485 = vdwg.mxu0
    %v1487 = vsel %vm540, %v1412, 0
    %1489 = vmatprep.subr.mxu0 0.0
    %1490 = vmatpush1.msra.mxu0 %v1166
    %1491 = vmatprep.subr.mxu0 0.0
    %1492 = vmatpush1.msra.mxu0 %v1167
    %1493 = vmatprep.subr.mxu0 0.0
    %1494 = vmatpush1.msra.mxu0 %v1168
    %1495 = vmatprep.subr.mxu0 0.0
    %1496 = vmatpush1.msra.mxu0 %v1169
    %1497 = vmatprep.subr.mxu0 0.0
    %1498 = vmatpush1.msra.mxu0 %v1170
    %1499 = vmatprep.subr.mxu0 0.0
    %1500 = vmatpush1.msra.mxu0 %v1171
    %1501 = vmatprep.subr.mxu0 0.0
    %1502 = vmatpush1.msra.mxu0 %v1172
    %1503 = vmatprep.subr.mxu0 0.0
    %1504 = vmatpush1.msra.mxu0 %v1173
    %1505 = vmatprep.subr.mxu0 0.0
    %1506 = vmatpush1.msra.mxu0 0.0
    %1507 = vmatprep.subr.mxu0 0.0
    %1508 = vmatpush1.msra.mxu0 0.0
    %1509 = vmatprep.subr.mxu0 0.0
    %1510 = vmatpush1.msra.mxu0 0.0
    %1511 = vmatprep.subr.mxu0 0.0
    %1512 = vmatpush1.msra.mxu0 0.0
    %1513 = vmatprep.subr.mxu0 0.0
    %1514 = vmatpush1.msra.mxu0 0.0
    %1515 = vmatprep.subr.mxu0 0.0
    %1516 = vmatpush1.msra.mxu0 0.0
    %1517 = vmatprep.subr.mxu0 0.0
    %1518 = vmatpush1.msra.mxu0 0.0
    %1519 = vmatprep.subr.mxu0 0.0
    %1520 = vmatpush1.msra.mxu0 0.0
    %1521 = vmatprep.subr.mxu0 0.0
    %1522 = vmatpush1.msra.mxu0 0.0
    %1523 = vmatprep.subr.mxu0 0.0
    %1524 = vmatpush1.msra.mxu0 0.0
    %1525 = vmatprep.subr.mxu0 0.0
    %1526 = vmatpush1.msra.mxu0 0.0
    %1527 = vmatprep.subr.mxu0 0.0
    %1528 = vmatpush1.msra.mxu0 0.0
    %1529 = vmatprep.subr.mxu0 0.0
    %1530 = vmatpush1.msra.mxu0 0.0
    %1531 = vmatprep.subr.mxu0 0.0
    %1532 = vmatpush1.msra.mxu0 0.0
    %1533 = vmatprep.subr.mxu0 0.0
    %1534 = vmatpush1.msra.mxu0 0.0
    %1535 = vmatprep.subr.mxu0 0.0
    %1536 = vmatpush1.msra.mxu0 0.0
    %1537 = vmatprep.subr.mxu0 0.0
    %1538 = vmatpush1.msra.mxu0 0.0
    %1539 = vmatprep.subr.mxu0 0.0
    %1540 = vmatpush1.msra.mxu0 0.0
    %1541 = vmatprep.subr.mxu0 0.0
    %1542 = vmatpush1.msra.mxu0 0.0
    %1543 = vmatprep.subr.mxu0 0.0
    %1544 = vmatpush1.msra.mxu0 0.0
    %1545 = vmatprep.subr.mxu0 0.0
    %1546 = vmatpush1.msra.mxu0 0.0
    %1547 = vmatprep.subr.mxu0 0.0
    %1548 = vmatpush1.msra.mxu0 0.0
    %1549 = vmatprep.subr.mxu0 0.0
    %1550 = vmatpush1.msra.mxu0 0.0
    %1551 = vmatprep.subr.mxu0 0.0
    %1552 = vmatpush1.msra.mxu0 0.0
    %1553 = vmatprep.mubr.f32.mxu0 0.0
    %1554 = vmatmul.mubr.f32.gmra.mrb[0].mxu0 %v1487
    %v1555 = vpop.f32.mrb[0].mxu0
    %v1556 = vadd.f32 0.0, %v1555
    %v1557 = vpop.f32.mrb[0].mxu0
    %1558 = vdwg.mxu0
    %v1559 = vld [vmem:[%s12] sm:$0xff]
    %v1560 = vld [vmem:[%s12 + $0x8] sm:$0xff]
    %v1561 = vld [vmem:[%s12 + $0x10] sm:$0xff]
    %v1562 = vld [vmem:[%s12 + $0x18] sm:$0xff]
    %v1563 = vld [vmem:[%s12 + $0x20] sm:$0xff]
    %v1564 = vld [vmem:[%s12 + $0x28] sm:$0xff]
    %v1565 = vld [vmem:[%s12 + $0x30] sm:$0xff]
    %v1566 = vld [vmem:[%s12 + $0x38] sm:$0xff]
    %v1567 = vld [vmem:[%s12 + $0x40] sm:$0xff]
    %v1568 = vld [vmem:[%s12 + $0x48] sm:$0xff]
    %v1569 = vld [vmem:[%s12 + $0x50] sm:$0xff]
    %v1570 = vld [vmem:[%s12 + $0x58] sm:$0xff]
    %v1571 = vld [vmem:[%s12 + $0x60] sm:$0xff]
    %v1572 = vld [vmem:[%s12 + $0x68] sm:$0xff]
    %v1573 = vld [vmem:[%s12 + $0x70] sm:$0xff]
    %v1574 = vld [vmem:[%s12 + $0x78] sm:$0xff]
    %v1575 = vld [vmem:[%s13] sm:$0x1]
    %v1577 = vlaneseq
    %v1578 = vshrl.u32 %v1577, 7
    %v1579 = vsub.s32 0, %v1578
    %v1580 = vrot.slane %v1575, %v1579
    %1582 = vmatprep.subr.mxu0 0.0
    %1583 = vmatpush1.msra.mxu0 %v1559
    %1584 = vmatprep.subr.mxu0 0.0
    %1585 = vmatpush1.msra.mxu0 %v1560
    %1586 = vmatprep.subr.mxu0 0.0
    %1587 = vmatpush1.msra.mxu0 %v1561
    %1588 = vmatprep.subr.mxu0 0.0
    %1589 = vmatpush1.msra.mxu0 %v1562
    %1590 = vmatprep.subr.mxu0 0.0
    %1591 = vmatpush1.msra.mxu0 %v1563
    %1592 = vmatprep.subr.mxu0 0.0
    %1593 = vmatpush1.msra.mxu0 %v1564
    %1594 = vmatprep.subr.mxu0 0.0
    %1595 = vmatpush1.msra.mxu0 %v1565
    %1596 = vmatprep.subr.mxu0 0.0
    %1597 = vmatpush1.msra.mxu0 %v1566
    %1598 = vmatprep.subr.mxu0 0.0
    %1599 = vmatpush1.msra.mxu0 %v1567
    %1600 = vmatprep.subr.mxu0 0.0
    %1601 = vmatpush1.msra.mxu0 %v1568
    %1602 = vmatprep.subr.mxu0 0.0
    %1603 = vmatpush1.msra.mxu0 %v1569
    %1604 = vmatprep.subr.mxu0 0.0
    %1605 = vmatpush1.msra.mxu0 %v1570
    %1606 = vmatprep.subr.mxu0 0.0
    %1607 = vmatpush1.msra.mxu0 %v1571
    %1608 = vmatprep.subr.mxu0 0.0
    %1609 = vmatpush1.msra.mxu0 %v1572
    %1610 = vmatprep.subr.mxu0 0.0
    %1611 = vmatpush1.msra.mxu0 %v1573
    %1612 = vmatprep.subr.mxu0 0.0
    %1613 = vmatpush1.msra.mxu0 %v1574
    %1614 = vmatprep.subr.mxu0 0.0
    %1615 = vmatpush1.msra.mxu0 0.0
    %1616 = vmatprep.subr.mxu0 0.0
    %1617 = vmatpush1.msra.mxu0 0.0
    %1618 = vmatprep.subr.mxu0 0.0
    %1619 = vmatpush1.msra.mxu0 0.0
    %1620 = vmatprep.subr.mxu0 0.0
    %1621 = vmatpush1.msra.mxu0 0.0
    %1622 = vmatprep.subr.mxu0 0.0
    %1623 = vmatpush1.msra.mxu0 0.0
    %1624 = vmatprep.subr.mxu0 0.0
    %1625 = vmatpush1.msra.mxu0 0.0
    %1626 = vmatprep.subr.mxu0 0.0
    %1627 = vmatpush1.msra.mxu0 0.0
    %1628 = vmatprep.subr.mxu0 0.0
    %1629 = vmatpush1.msra.mxu0 0.0
    %1630 = vmatprep.subr.mxu0 0.0
    %1631 = vmatpush1.msra.mxu0 0.0
    %1632 = vmatprep.subr.mxu0 0.0
    %1633 = vmatpush1.msra.mxu0 0.0
    %1634 = vmatprep.subr.mxu0 0.0
    %1635 = vmatpush1.msra.mxu0 0.0
    %1636 = vmatprep.subr.mxu0 0.0
    %1637 = vmatpush1.msra.mxu0 0.0
    %1638 = vmatprep.subr.mxu0 0.0
    %1639 = vmatpush1.msra.mxu0 0.0
    %1640 = vmatprep.subr.mxu0 0.0
    %1641 = vmatpush1.msra.mxu0 0.0
    %1642 = vmatprep.subr.mxu0 0.0
    %1643 = vmatpush1.msra.mxu0 0.0
    %1644 = vmatprep.subr.mxu0 0.0
    %1645 = vmatpush1.msra.mxu0 0.0
    %1646 = vmatprep.mubr.f32.mxu0 0.0
    %1647 = vmatmul.mubr.f32.gmra.mrb[0].mxu0 %v1483
    %v1648 = vpop.f32.mrb[0].mxu0
    %v1649 = vadd.f32 %v1580, %v1648
    %v1650 = vpop.f32.mrb[0].mxu0
    %1651 = vmatprep.mubr.f32.mxu0 0.0
    %1652 = vmatmul.mubr.f32.gmra.mrb[0].mxu0 %v1556
    %v1653 = vpop.f32.mrb[0].mxu0
    %v1654 = vadd.f32 %v1580, %v1653
    %v1655 = vpop.f32.mrb[0].mxu0
    %1656 = vdwg.mxu0
    %v1657 = vmax.f32 %v1649, 0.0
    %v1658 = vmax.f32 %v1654, 0.0
    %v1659 = vadd.f32 %v1657, %v892
    %v1660 = vadd.f32 %v1658, %v893
    %1661 = vst [vmem:[#allocation2] sm:$0xff] %v1659
    %1662 = vst [vmem:[#allocation2 + $0x8] sm:$0xff] %v1660
    // Predicated region
    $region58: #{transformer_forward.1} parent=1 // pred_check
      _
    $region59: #{transformer_forward.1} parent=1 // pred_check_branch
      %1664 = sbr.rel (0) target = $region61
    $region60: #{transformer_forward.1} parent=1 // pred_region
      %s1666 = ssub.s32 256, 256
      %1667 = vsyncadd [#allocation3], %s1666
      %s1668 = sshll.u32 [#allocation2], 4
      %s1669 = int_to_ptr.vmem [resolvable:$true] %s1668
      %1674 = dma.vmem_to_hbm [thread:$0]  %s1669, 256, %s14, [#allocation3], 128, 128, 8
    $region61: #{transformer_forward.1} parent=1 // pred_fallthru
      _
    // Predicated region
    $region62: #{transformer_forward.1} parent=1 // pred_check
      _
    $region63: #{transformer_forward.1} parent=1 // pred_check_branch
      %1676 = sbr.rel (0) target = $region65
    $region64: #{transformer_forward.1} parent=1 // pred_region
      %1677 = dma.done [#allocation3], 256
    $region65: #{transformer_forward.1} parent=1 // pred_fallthru
      _
    %1678 = vsyncpa [#allocation3], 1

</llo_original>
